<compile_context>
chip_gen: v7x
topology: tpu7x:2x2x1
jax: 0.10.0
libtpu: 0.0.40
codegen_flags: <defaults>
</compile_context>

<pallas_src>
import functools

import jax
import jax.numpy as jnp
from jax.experimental import pallas as pl
from jax.experimental.pallas import tpu as pltpu


def ffn_layer_kernel(x_ref, w1_ref, b1_ref, w2_ref, b2_ref, g_ref, beta_ref,
                     o_ref, *, eps):
    # x_ref: (TM, D)  w1: (D, F) bf16  b1: (1, F) f32  w2: (F, D) bf16
    # b2: (1, D) f32  g/beta: (1, D) f32  o_ref: (TM, D)
    x = x_ref[...]

    # linear1 (+ bias) on the bf16 MXU path with f32 accumulation.  Dropout is
    # identity (p = 0.0).  ReLU after the monotone bf16 cast == cast(ReLU(.)),
    # so only the bf16 (TM, F) intermediate is kept for the second matmul.
    h = jnp.dot(x.astype(jnp.bfloat16), w1_ref[...],
                preferred_element_type=jnp.float32) + b1_ref[...]
    h = jnp.maximum(h.astype(jnp.bfloat16), 0)

    # linear2 (bf16 operands, f32 accumulation).
    y = jnp.dot(h, w2_ref[...],
                preferred_element_type=jnp.float32) + b2_ref[...]

    # residual + LayerNorm over d_model, all in f32.
    t = x.astype(jnp.float32) + y
    mean = jnp.mean(t, axis=-1, keepdims=True)
    var = jnp.mean(jnp.square(t - mean), axis=-1, keepdims=True)
    t_hat = (t - mean) * jax.lax.rsqrt(var + eps)
    o_ref[...] = (t_hat * g_ref[...] + beta_ref[...]).astype(o_ref.dtype)


def _round_up(v, m):
    return ((v + m - 1) // m) * m


def _choose_tm(n, dff):
    # Big tiles amortize the ~0.35 us per-grid-step overhead (measured ~85% of
    # HBM roofline at tile 512 on v6e).  Cap when the (tm, dff) hidden
    # intermediate would start eating too much VMEM.
    target = 512 if dff <= 2048 else 256
    if n >= 2 * target:
        return target
    # Small N: split rows into (at least) 2 blocks so v7x's two TensorCores
    # both get work; keep the tile a multiple of 8 sublanes.
    half = -(-n // 2)
    return max(8, _round_up(half, 8))


def _vmem_ceiling_bytes():
    # ~80% of physical VMEM (v5e/v6e: 128 MiB, v7x: 64 MiB), leaving headroom
    # for Mosaic's internal scratch.
    try:
        cap = pltpu.get_tpu_info().vmem_capacity_bytes
    except Exception:  # pragma: no cover - conservative fallback
        cap = 64 * 1024 * 1024
    return int(0.8 * cap)


def ffn_layer(x, w1, b1, w2, b2, gamma, beta, *, eps=1e-5, tm=None):
    """x: (..., d_model). Returns same shape and dtype as x."""
    orig_shape = x.shape
    orig_dtype = x.dtype
    d_model = orig_shape[-1]
    dff = w1.shape[1]

    x2d = x.reshape(-1, d_model)
    n = x2d.shape[0]

    if tm is None:
        tm = _choose_tm(n, dff)
    tm = max(8, min(tm, _round_up(n, 8)))
    grid_m = int(pl.cdiv(n, tm))

    # Weights as bf16 for the MXU; biases / LayerNorm affine stay f32.
    w1b = w1.astype(jnp.bfloat16)
    w2b = w2.astype(jnp.bfloat16)
    b1r = b1.reshape(1, dff).astype(jnp.float32)
    b2r = b2.reshape(1, d_model).astype(jnp.float32)
    gr = gamma.reshape(1, d_model).astype(jnp.float32)
    br = beta.reshape(1, d_model).astype(jnp.float32)

    kernel = functools.partial(ffn_layer_kernel, eps=eps)

    itemsize_in = jnp.dtype(orig_dtype).itemsize
    # Rough VMEM budget: double-buffered x/out tiles, bf16 weights (counted as
    # double-buffered even though we request Buffered(1)), small f32 vectors,
    # plus the (tm, dff) f32+bf16 hidden intermediates and the f32 residual.
    est_vmem = (2 * tm * d_model * itemsize_in           # x tiles (2 bufs)
                + 2 * tm * d_model * itemsize_in         # out tiles (2 bufs)
                + 2 * 2 * d_model * dff * 2              # bf16 weights
                + 2 * (dff + 3 * d_model) * 4            # b1, b2, gamma, beta
                + tm * dff * (4 + 2)                     # f32 + bf16 hidden
                + tm * d_model * 4)                      # f32 residual/t
    vmem_limit = int(min(max(2 * est_vmem, 32 * 1024 * 1024),
                         _vmem_ceiling_bytes()))

    cost = pl.CostEstimate(
        flops=int(4 * n * d_model * dff),                # two matmuls
        transcendentals=int(n),                          # one rsqrt per row
        bytes_accessed=int(n * d_model * itemsize_in * 2   # x in + out
                           + 2 * d_model * dff * 2          # bf16 weights
                           + (dff + 3 * d_model) * 4),       # b1,b2,g,beta
    )

    def build_call(single_buffer_weights):
        inv_kwargs = {}
        if single_buffer_weights:
            # Grid-invariant operands are fetched once; single-buffer them to
            # reclaim one full copy of each weight in VMEM (matters on v7x).
            inv_kwargs = dict(pipeline_mode=pl.Buffered(1))

        def inv_spec(shape):
            return pl.BlockSpec(shape, lambda i: (0, 0), **inv_kwargs)

        return pl.pallas_call(
            kernel,
            out_shape=jax.ShapeDtypeStruct((n, d_model), orig_dtype),
            grid_spec=pltpu.PrefetchScalarGridSpec(
                num_scalar_prefetch=0,
                grid=(grid_m,),
                in_specs=[
                    pl.BlockSpec((tm, d_model), lambda i: (i, 0)),  # x rows
                    inv_spec((d_model, dff)),                       # W1 (bf16)
                    inv_spec((1, dff)),                             # b1
                    inv_spec((dff, d_model)),                       # W2 (bf16)
                    inv_spec((1, d_model)),                         # b2
                    inv_spec((1, d_model)),                         # gamma
                    inv_spec((1, d_model)),                         # beta
                ],
                out_specs=pl.BlockSpec((tm, d_model), lambda i: (i, 0)),
            ),
            compiler_params=pltpu.CompilerParams(
                dimension_semantics=("parallel",),
                vmem_limit_bytes=vmem_limit,
            ),
            cost_estimate=cost,
        )

    try:
        out = build_call(True)(x2d, w1b, b1r, w2b, b2r, gr, br)
    except (TypeError, AttributeError, Exception):
        # Fallback for jax versions without pipeline_mode / Buffered(1).
        out = build_call(False)(x2d, w1b, b1r, w2b, b2r, gr, br)

    return out.reshape(orig_shape)


def _xavier_uniform(key, fan_in, fan_out, shape):
    bound = (6.0 / (fan_in + fan_out)) ** 0.5
    return jax.random.uniform(key, shape, jnp.float32, -bound, bound)


def _linear_bias(key, fan_in, shape):
    bound = 1.0 / (fan_in ** 0.5)
    return jax.random.uniform(key, shape, jnp.float32, -bound, bound)


def reference_ffn(x, w1, b1, w2, b2, gamma, beta, eps=1e-5):
    # Pure-f32 reference (matches the PyTorch module's forward_post).
    h = jnp.maximum(x @ w1 + b1, 0.0)
    t = x + (h @ w2 + b2)
    mean = jnp.mean(t, axis=-1, keepdims=True)
    var = jnp.mean(jnp.square(t - mean), axis=-1, keepdims=True)
    return (t - mean) * jax.lax.rsqrt(var + eps) * gamma + beta


if __name__ == "__main__":
    # Lane-dense small shapes: (seq, batch, d_model) = (100, 2, 128),
    # dim_feedforward = 256.  N = seq*batch = 200 is not a multiple of the row
    # tile, so the ragged-last-block path (no padding, masked writeback) is
    # exercised, and the tile chooser gives grid_m = 2 (both v7x TCs busy).
    # Note: at d_model=128 / dff=256 the kernel is HBM-bandwidth-bound, not
    # MXU-bound; real DETR d_model=256 fills the 256-wide MXU.
    seq, batch, d_model, dim_feedforward = 100, 2, 128, 256

    key = jax.random.PRNGKey(0)
    k_x, k_w1, k_b1, k_w2, k_b2 = jax.random.split(key, 5)

    x = jax.random.normal(k_x, (seq, batch, d_model), jnp.float32)

    # Parameters: xavier_uniform for weight matrices (stored as (in, out) so
    # the kernel computes x @ W — same distribution as PyTorch's (out, in)
    # layout), PyTorch-Linear-default uniform for biases, ones/zeros for
    # LayerNorm.
    w1 = _xavier_uniform(k_w1, d_model, dim_feedforward,
                         (d_model, dim_feedforward))
    b1 = _linear_bias(k_b1, d_model, (dim_feedforward,))
    w2 = _xavier_uniform(k_w2, dim_feedforward, d_model,
                         (dim_feedforward, d_model))
    b2 = _linear_bias(k_b2, dim_feedforward, (d_model,))
    gamma = jnp.ones((d_model,), jnp.float32)
    beta = jnp.zeros((d_model,), jnp.float32)

    out = ffn_layer(x, w1, b1, w2, b2, gamma, beta)
    out = jax.block_until_ready(out)

    ref = reference_ffn(x, w1, b1, w2, b2, gamma, beta)
    assert out.shape == x.shape and out.dtype == x.dtype
    # bf16 matmul operands (f32 accumulation) => small divergence from the
    # pure-f32 reference; tolerance relaxed accordingly (intentional accuracy
    # trade-off; residual + LayerNorm stay in f32).
    assert jnp.allclose(out, ref, atol=2e-2, rtol=2e-2), "mismatch vs reference"

    print("KERNEL_OK")
</pallas_src>

<mosaic_0001>
module attributes {stable_mosaic.version = 11 : i64} {
  func.func @ffn_layer_kernel(%arg0: i32, %arg1: memref<104x128xf32, #tpu.memory_space<vmem>>, %arg2: memref<128x256xbf16, #tpu.memory_space<vmem>>, %arg3: memref<1x256xf32, #tpu.memory_space<vmem>>, %arg4: memref<256x128xbf16, #tpu.memory_space<vmem>>, %arg5: memref<1x128xf32, #tpu.memory_space<vmem>>, %arg6: memref<1x128xf32, #tpu.memory_space<vmem>>, %arg7: memref<1x128xf32, #tpu.memory_space<vmem>>, %arg8: memref<104x128xf32, #tpu.memory_space<vmem>>) attributes {dimension_semantics = [#tpu.dimension_semantics<parallel>], iteration_bounds = array<i64: 2>, scalar_prefetch = 0 : i64, scratch_operands = 0 : i64, tpu.core_type = #tpu.core_type<tc>, window_params = [{transform_indices = @transform_0, window_bounds = array<i64: 104, 128>}, {pipeline_mode = #tpu.pipeline_mode<synchronous>, transform_indices = @transform_1, window_bounds = array<i64: 128, 256>}, {pipeline_mode = #tpu.pipeline_mode<synchronous>, transform_indices = @transform_2, window_bounds = array<i64: 1, 256>}, {pipeline_mode = #tpu.pipeline_mode<synchronous>, transform_indices = @transform_3, window_bounds = array<i64: 256, 128>}, {pipeline_mode = #tpu.pipeline_mode<synchronous>, transform_indices = @transform_4, window_bounds = array<i64: 1, 128>}, {pipeline_mode = #tpu.pipeline_mode<synchronous>, transform_indices = @transform_5, window_bounds = array<i64: 1, 128>}, {pipeline_mode = #tpu.pipeline_mode<synchronous>, transform_indices = @transform_6, window_bounds = array<i64: 1, 128>}, {transform_indices = @transform_7, window_bounds = array<i64: 104, 128>}]} {
    %c0 = arith.constant 0 : index
    %c0_0 = arith.constant 0 : index
    %0 = vector.load %arg1[%c0, %c0_0] : memref<104x128xf32, #tpu.memory_space<vmem>>, vector<104x128xf32>
    %1 = arith.truncf %0 : vector<104x128xf32> to vector<104x128xbf16>
    %c0_1 = arith.constant 0 : index
    %c0_2 = arith.constant 0 : index
    %2 = vector.load %arg2[%c0_1, %c0_2] : memref<128x256xbf16, #tpu.memory_space<vmem>>, vector<128x256xbf16>
    %cst = arith.constant dense<0.000000e+00> : vector<104x256xf32>
    %3 = tpu.matmul %1, %2, %cst {dimension_numbers = #tpu.dot_dimension_numbers<[1], [0], [0], [1], [0, 0, 1, 1], [], []>} : vector<104x128xbf16>, vector<128x256xbf16>, vector<104x256xf32> -> vector<104x256xf32>
    %c0_3 = arith.constant 0 : index
    %c0_4 = arith.constant 0 : index
    %4 = vector.load %arg3[%c0_3, %c0_4] : memref<1x256xf32, #tpu.memory_space<vmem>>, vector<1x256xf32>
    %5 = vector.broadcast %4 : vector<1x256xf32> to vector<104x256xf32>
    %6 = arith.addf %3, %5 : vector<104x256xf32>
    %7 = arith.truncf %6 : vector<104x256xf32> to vector<104x256xbf16>
    %cst_5 = arith.constant 0.000000e+00 : bf16
    %8 = vector.broadcast %cst_5 : bf16 to vector<104x256xbf16>
    %9 = arith.maximumf %7, %8 : vector<104x256xbf16>
    %c0_6 = arith.constant 0 : index
    %c0_7 = arith.constant 0 : index
    %10 = vector.load %arg4[%c0_6, %c0_7] : memref<256x128xbf16, #tpu.memory_space<vmem>>, vector<256x128xbf16>
    %cst_8 = arith.constant dense<0.000000e+00> : vector<104x128xf32>
    %11 = tpu.matmul %9, %10, %cst_8 {dimension_numbers = #tpu.dot_dimension_numbers<[1], [0], [0], [1], [0, 0, 1, 1], [], []>} : vector<104x256xbf16>, vector<256x128xbf16>, vector<104x128xf32> -> vector<104x128xf32>
    %c0_9 = arith.constant 0 : index
    %c0_10 = arith.constant 0 : index
    %12 = vector.load %arg5[%c0_9, %c0_10] : memref<1x128xf32, #tpu.memory_space<vmem>>, vector<1x128xf32>
    %13 = vector.broadcast %12 : vector<1x128xf32> to vector<104x128xf32>
    %14 = arith.addf %11, %13 : vector<104x128xf32>
    %15 = arith.addf %0, %14 : vector<104x128xf32>
    %cst_11 = arith.constant dense<0.000000e+00> : vector<104xf32>
    %16 = vector.multi_reduction <add>, %15, %cst_11 [1] : vector<104x128xf32> to vector<104xf32>
    %17 = vector.shape_cast %16 : vector<104xf32> to vector<104x1xf32>
    %cst_12 = arith.constant 1.280000e+02 : f32
    %18 = vector.broadcast %cst_12 : f32 to vector<104x1xf32>
    %19 = arith.divf %17, %18 : vector<104x1xf32>
    %20 = vector.broadcast %19 : vector<104x1xf32> to vector<104x128xf32>
    %21 = arith.subf %15, %20 : vector<104x128xf32>
    %22 = arith.mulf %21, %21 : vector<104x128xf32>
    %cst_13 = arith.constant dense<0.000000e+00> : vector<104xf32>
    %23 = vector.multi_reduction <add>, %22, %cst_13 [1] : vector<104x128xf32> to vector<104xf32>
    %24 = vector.shape_cast %23 : vector<104xf32> to vector<104x1xf32>
    %cst_14 = arith.constant 1.280000e+02 : f32
    %25 = vector.broadcast %cst_14 : f32 to vector<104x1xf32>
    %26 = arith.divf %24, %25 : vector<104x1xf32>
    %27 = vector.broadcast %19 : vector<104x1xf32> to vector<104x128xf32>
    %28 = arith.subf %15, %27 : vector<104x128xf32>
    %cst_15 = arith.constant 9.99999974E-6 : f32
    %29 = vector.broadcast %cst_15 : f32 to vector<104x1xf32>
    %30 = arith.addf %26, %29 : vector<104x1xf32>
    %31 = math.rsqrt %30 : vector<104x1xf32>
    %32 = vector.broadcast %31 : vector<104x1xf32> to vector<104x128xf32>
    %33 = arith.mulf %28, %32 : vector<104x128xf32>
    %c0_16 = arith.constant 0 : index
    %c0_17 = arith.constant 0 : index
    %34 = vector.load %arg6[%c0_16, %c0_17] : memref<1x128xf32, #tpu.memory_space<vmem>>, vector<1x128xf32>
    %35 = vector.broadcast %34 : vector<1x128xf32> to vector<104x128xf32>
    %36 = arith.mulf %33, %35 : vector<104x128xf32>
    %c0_18 = arith.constant 0 : index
    %c0_19 = arith.constant 0 : index
    %37 = vector.load %arg7[%c0_18, %c0_19] : memref<1x128xf32, #tpu.memory_space<vmem>>, vector<1x128xf32>
    %38 = vector.broadcast %37 : vector<1x128xf32> to vector<104x128xf32>
    %39 = arith.addf %36, %38 : vector<104x128xf32>
    %c0_20 = arith.constant 0 : index
    %c0_21 = arith.constant 0 : index
    %40 = vector.load %arg8[%c0_20, %c0_21] : memref<104x128xf32, #tpu.memory_space<vmem>>, vector<104x128xf32>
    tpu.vector_store %arg8[%c0_20, %c0_21], %39 {strides = array<i32>} : memref<104x128xf32, #tpu.memory_space<vmem>>, vector<104x128xf32>,
    return
  }
  func.func @transform_0(%arg0: i32) -> (i32, i32) {
    %c0_i32 = arith.constant 0 : i32
    %c0_i32_0 = arith.constant 0 : i32
    return %arg0, %c0_i32 : i32, i32
  }
  func.func @transform_1(%arg0: i32) -> (i32, i32) {
    %c0_i32 = arith.constant 0 : i32
    %c0_i32_0 = arith.constant 0 : i32
    %c0_i32_1 = arith.constant 0 : i32
    return %c0_i32, %c0_i32_0 : i32, i32
  }
  func.func @transform_2(%arg0: i32) -> (i32, i32) {
    %c0_i32 = arith.constant 0 : i32
    %c0_i32_0 = arith.constant 0 : i32
    %c0_i32_1 = arith.constant 0 : i32
    return %c0_i32, %c0_i32_0 : i32, i32
  }
  func.func @transform_3(%arg0: i32) -> (i32, i32) {
    %c0_i32 = arith.constant 0 : i32
    %c0_i32_0 = arith.constant 0 : i32
    %c0_i32_1 = arith.constant 0 : i32
    return %c0_i32, %c0_i32_0 : i32, i32
  }
  func.func @transform_4(%arg0: i32) -> (i32, i32) {
    %c0_i32 = arith.constant 0 : i32
    %c0_i32_0 = arith.constant 0 : i32
    %c0_i32_1 = arith.constant 0 : i32
    return %c0_i32, %c0_i32_0 : i32, i32
  }
  func.func @transform_5(%arg0: i32) -> (i32, i32) {
    %c0_i32 = arith.constant 0 : i32
    %c0_i32_0 = arith.constant 0 : i32
    %c0_i32_1 = arith.constant 0 : i32
    return %c0_i32, %c0_i32_0 : i32, i32
  }
  func.func @transform_6(%arg0: i32) -> (i32, i32) {
    %c0_i32 = arith.constant 0 : i32
    %c0_i32_0 = arith.constant 0 : i32
    %c0_i32_1 = arith.constant 0 : i32
    return %c0_i32, %c0_i32_0 : i32, i32
  }
  func.func @transform_7(%arg0: i32) -> (i32, i32) {
    %c0_i32 = arith.constant 0 : i32
    %c0_i32_0 = arith.constant 0 : i32
    return %arg0, %c0_i32 : i32, i32
  }
}

module attributes {stable_mosaic.version = 11 : i64} {
  func.func @ffn_layer_kernel(%arg0: i32, %arg1: memref<104x128xf32, #tpu.memory_space<vmem>>, %arg2: memref<128x256xbf16, #tpu.memory_space<vmem>>, %arg3: memref<1x256xf32, #tpu.memory_space<vmem>>, %arg4: memref<256x128xbf16, #tpu.memory_space<vmem>>, %arg5: memref<1x128xf32, #tpu.memory_space<vmem>>, %arg6: memref<1x128xf32, #tpu.memory_space<vmem>>, %arg7: memref<1x128xf32, #tpu.memory_space<vmem>>, %arg8: memref<104x128xf32, #tpu.memory_space<vmem>>) attributes {dimension_semantics = [#tpu.dimension_semantics<parallel>], iteration_bounds = array<i64: 2>, scalar_prefetch = 0 : i64, scratch_operands = 0 : i64, tpu.core_type = #tpu.core_type<tc>, window_params = [{transform_indices = @transform_0, window_bounds = array<i64: 104, 128>}, {pipeline_mode = #tpu.pipeline_mode<synchronous>, transform_indices = @transform_1, window_bounds = array<i64: 128, 256>}, {pipeline_mode = #tpu.pipeline_mode<synchronous>, transform_indices = @transform_2, window_bounds = array<i64: 1, 256>}, {pipeline_mode = #tpu.pipeline_mode<synchronous>, transform_indices = @transform_3, window_bounds = array<i64: 256, 128>}, {pipeline_mode = #tpu.pipeline_mode<synchronous>, transform_indices = @transform_4, window_bounds = array<i64: 1, 128>}, {pipeline_mode = #tpu.pipeline_mode<synchronous>, transform_indices = @transform_5, window_bounds = array<i64: 1, 128>}, {pipeline_mode = #tpu.pipeline_mode<synchronous>, transform_indices = @transform_6, window_bounds = array<i64: 1, 128>}, {transform_indices = @transform_7, window_bounds = array<i64: 104, 128>}]} {
    %c0 = arith.constant 0 : index
    %c0_0 = arith.constant 0 : index
    %0 = vector.load %arg1[%c0, %c0_0] : memref<104x128xf32, #tpu.memory_space<vmem>>, vector<104x128xf32>
    %1 = arith.truncf %0 : vector<104x128xf32> to vector<104x128xbf16>
    %c0_1 = arith.constant 0 : index
    %c0_2 = arith.constant 0 : index
    %2 = vector.load %arg2[%c0_1, %c0_2] : memref<128x256xbf16, #tpu.memory_space<vmem>>, vector<128x256xbf16>
    %cst = arith.constant dense<0.000000e+00> : vector<104x256xf32>
    %3 = tpu.matmul %1, %2, %cst {dimension_numbers = #tpu.dot_dimension_numbers<[1], [0], [0], [1], [0, 0, 1, 1], [], []>} : vector<104x128xbf16>, vector<128x256xbf16>, vector<104x256xf32> -> vector<104x256xf32>
    %c0_3 = arith.constant 0 : index
    %c0_4 = arith.constant 0 : index
    %4 = vector.load %arg3[%c0_3, %c0_4] : memref<1x256xf32, #tpu.memory_space<vmem>>, vector<1x256xf32>
    %5 = vector.broadcast %4 : vector<1x256xf32> to vector<104x256xf32>
    %6 = arith.addf %3, %5 : vector<104x256xf32>
    %7 = arith.truncf %6 : vector<104x256xf32> to vector<104x256xbf16>
    %cst_5 = arith.constant 0.000000e+00 : bf16
    %8 = vector.broadcast %cst_5 : bf16 to vector<104x256xbf16>
    %9 = arith.maximumf %7, %8 : vector<104x256xbf16>
    %c0_6 = arith.constant 0 : index
    %c0_7 = arith.constant 0 : index
    %10 = vector.load %arg4[%c0_6, %c0_7] : memref<256x128xbf16, #tpu.memory_space<vmem>>, vector<256x128xbf16>
    %cst_8 = arith.constant dense<0.000000e+00> : vector<104x128xf32>
    %11 = tpu.matmul %9, %10, %cst_8 {dimension_numbers = #tpu.dot_dimension_numbers<[1], [0], [0], [1], [0, 0, 1, 1], [], []>} : vector<104x256xbf16>, vector<256x128xbf16>, vector<104x128xf32> -> vector<104x128xf32>
    %c0_9 = arith.constant 0 : index
    %c0_10 = arith.constant 0 : index
    %12 = vector.load %arg5[%c0_9, %c0_10] : memref<1x128xf32, #tpu.memory_space<vmem>>, vector<1x128xf32>
    %13 = vector.broadcast %12 : vector<1x128xf32> to vector<104x128xf32>
    %14 = arith.addf %11, %13 : vector<104x128xf32>
    %15 = arith.addf %0, %14 : vector<104x128xf32>
    %cst_11 = arith.constant dense<0.000000e+00> : vector<104xf32>
    %16 = vector.multi_reduction <add>, %15, %cst_11 [1] : vector<104x128xf32> to vector<104xf32>
    %17 = vector.shape_cast %16 : vector<104xf32> to vector<104x1xf32>
    %cst_12 = arith.constant 1.280000e+02 : f32
    %18 = vector.broadcast %cst_12 : f32 to vector<104x1xf32>
    %19 = arith.divf %17, %18 : vector<104x1xf32>
    %20 = vector.broadcast %19 : vector<104x1xf32> to vector<104x128xf32>
    %21 = arith.subf %15, %20 : vector<104x128xf32>
    %22 = arith.mulf %21, %21 : vector<104x128xf32>
    %cst_13 = arith.constant dense<0.000000e+00> : vector<104xf32>
    %23 = vector.multi_reduction <add>, %22, %cst_13 [1] : vector<104x128xf32> to vector<104xf32>
    %24 = vector.shape_cast %23 : vector<104xf32> to vector<104x1xf32>
    %cst_14 = arith.constant 1.280000e+02 : f32
    %25 = vector.broadcast %cst_14 : f32 to vector<104x1xf32>
    %26 = arith.divf %24, %25 : vector<104x1xf32>
    %27 = vector.broadcast %19 : vector<104x1xf32> to vector<104x128xf32>
    %28 = arith.subf %15, %27 : vector<104x128xf32>
    %cst_15 = arith.constant 9.99999974E-6 : f32
    %29 = vector.broadcast %cst_15 : f32 to vector<104x1xf32>
    %30 = arith.addf %26, %29 : vector<104x1xf32>
    %31 = math.rsqrt %30 : vector<104x1xf32>
    %32 = vector.broadcast %31 : vector<104x1xf32> to vector<104x128xf32>
    %33 = arith.mulf %28, %32 : vector<104x128xf32>
    %c0_16 = arith.constant 0 : index
    %c0_17 = arith.constant 0 : index
    %34 = vector.load %arg6[%c0_16, %c0_17] : memref<1x128xf32, #tpu.memory_space<vmem>>, vector<1x128xf32>
    %35 = vector.broadcast %34 : vector<1x128xf32> to vector<104x128xf32>
    %36 = arith.mulf %33, %35 : vector<104x128xf32>
    %c0_18 = arith.constant 0 : index
    %c0_19 = arith.constant 0 : index
    %37 = vector.load %arg7[%c0_18, %c0_19] : memref<1x128xf32, #tpu.memory_space<vmem>>, vector<1x128xf32>
    %38 = vector.broadcast %37 : vector<1x128xf32> to vector<104x128xf32>
    %39 = arith.addf %36, %38 : vector<104x128xf32>
    %c0_20 = arith.constant 0 : index
    %c0_21 = arith.constant 0 : index
    %40 = vector.load %arg8[%c0_20, %c0_21] : memref<104x128xf32, #tpu.memory_space<vmem>>, vector<104x128xf32>
    tpu.vector_store %arg8[%c0_20, %c0_21], %39 {strides = array<i32>} : memref<104x128xf32, #tpu.memory_space<vmem>>, vector<104x128xf32>,
    return
  }
  func.func @transform_0(%arg0: i32) -> (i32, i32) {
    %c0_i32 = arith.constant 0 : i32
    %c0_i32_0 = arith.constant 0 : i32
    return %arg0, %c0_i32 : i32, i32
  }
  func.func @transform_1(%arg0: i32) -> (i32, i32) {
    %c0_i32 = arith.constant 0 : i32
    %c0_i32_0 = arith.constant 0 : i32
    %c0_i32_1 = arith.constant 0 : i32
    return %c0_i32, %c0_i32_0 : i32, i32
  }
  func.func @transform_2(%arg0: i32) -> (i32, i32) {
    %c0_i32 = arith.constant 0 : i32
    %c0_i32_0 = arith.constant 0 : i32
    %c0_i32_1 = arith.constant 0 : i32
    return %c0_i32, %c0_i32_0 : i32, i32
  }
  func.func @transform_3(%arg0: i32) -> (i32, i32) {
    %c0_i32 = arith.constant 0 : i32
    %c0_i32_0 = arith.constant 0 : i32
    %c0_i32_1 = arith.constant 0 : i32
    return %c0_i32, %c0_i32_0 : i32, i32
  }
  func.func @transform_4(%arg0: i32) -> (i32, i32) {
    %c0_i32 = arith.constant 0 : i32
    %c0_i32_0 = arith.constant 0 : i32
    %c0_i32_1 = arith.constant 0 : i32
    return %c0_i32, %c0_i32_0 : i32, i32
  }
  func.func @transform_5(%arg0: i32) -> (i32, i32) {
    %c0_i32 = arith.constant 0 : i32
    %c0_i32_0 = arith.constant 0 : i32
    %c0_i32_1 = arith.constant 0 : i32
    return %c0_i32, %c0_i32_0 : i32, i32
  }
  func.func @transform_6(%arg0: i32) -> (i32, i32) {
    %c0_i32 = arith.constant 0 : i32
    %c0_i32_0 = arith.constant 0 : i32
    %c0_i32_1 = arith.constant 0 : i32
    return %c0_i32, %c0_i32_0 : i32, i32
  }
  func.func @transform_7(%arg0: i32) -> (i32, i32) {
    %c0_i32 = arith.constant 0 : i32
    %c0_i32_0 = arith.constant 0 : i32
    return %arg0, %c0_i32 : i32, i32
  }
}

</mosaic_0001>

<llo_original>
// kernel: tpu_custom_call.1
$region0: #{tpu_custom_call.1}
  #allocation0 [shape = 'u32[]', space=smem, size = 0x4, offset = 0x4, fixed_abs, tag = 'smem constant byte address 0x4 - core index']
  #allocation1 [shape = 'u32[144,128]{1,0:T(1,128)}', space=vmem, size = 0x12000, scoped, tag = 'internal scratch']
  %s0 = inlined_call_operand.hbm [shape: f32[200,128], index: 0, kind: input, shape index: {}]
  %s1 = inlined_call_operand.hbm [shape: bf16[128,256], index: 1, kind: input, shape index: {}]
  %s2 = inlined_call_operand.vmem [shape: f32[1,256], index: 2, kind: input, shape index: {}]
  %s3 = inlined_call_operand.hbm [shape: bf16[256,128], index: 3, kind: input, shape index: {}]
  %s4 = inlined_call_operand.vmem [shape: f32[1,128], index: 4, kind: input, shape index: {}]
  %s5 = inlined_call_operand.vmem [shape: f32[1,128], index: 5, kind: input, shape index: {}]
  %s6 = inlined_call_operand.vmem [shape: f32[1,128], index: 6, kind: input, shape index: {}]
  %s7 = inlined_call_operand.hbm [shape: f32[200,128], index: 7, kind: output, shape index: {}]
  %s8 = sld [smem:[#allocation0]]
  $region73: #{tpu_custom_call.1} parent=0
    _
  %s10 = ssub.s32 1, %s8
  %s11 = scalar_select 0, %s10, %s8
  $region1: #{tpu_custom_call.1} parent=0
    #allocation2 [shape = 'u8[106496]{0}', space=vmem, size = 0x1a000, scoped, tag = 'input window, operand 0']
    #allocation3 [shape = 's32[2]{0}', space=sflag, size = 0x8, scoped, tag = 'scoped memory for tpu_custom_call.1']
    #allocation4 [shape = 's32[2]{0}', space=sflag, size = 0x8, scoped, tag = 'scoped memory for tpu_custom_call.1']
    #allocation5 [shape = 'u8[65536]{0}', space=vmem, size = 0x10000, scoped, tag = 'input window, operand 1, single buffered']
    #allocation6 [shape = 's32[1]{0}', space=sflag, size = 0x4, scoped, tag = 'scoped memory for tpu_custom_call.1']
    #allocation7 [shape = 'u8[65536]{0}', space=vmem, size = 0x10000, scoped, tag = 'input window, operand 3, single buffered']
    #allocation8 [shape = 'u8[106496]{0}', space=vmem, size = 0x1a000, scoped, tag = 'output window, operand 0']
    %12 = vsyncpa [#allocation3], 0
    %s13 = scalar_lea.sflag [#allocation3], 1
    %14 = vsyncpa %s13, 0
    %15 = vsyncpa [#allocation6], 0
    %16 = vsyncpa [#allocation4], 0
    %s17 = scalar_lea.sflag [#allocation4], 1
    %18 = vsyncpa %s17, 0
    loop: start=0, step=1, limit=4
    $region2: #{tpu_custom_call.1} parent=1 // loop_pre_header
      _
    $region3: #{tpu_custom_call.1} parent=1 // loop_header
      %s20 = sphi 0, %s24
      %p21 = scmp.ge.s32.totalorder %s20, 4
      %s30 = sphi 0, %s32
      %s33 = sphi 0, %s30
      %s34 = sphi 0, %s33
      %s50 = sphi 0, %s34
      %s54 = sphi 0, %s54
      %s56 = sphi 0, %s54
      %s57 = sphi 0, %s56
      %s71 = sphi 0, %s57
      %s75 = sphi 0, %s75
      %s77 = sphi 0, %s75
      %s78 = sphi 0, %s77
      %s92 = sphi 0, %s78
      %s96 = sphi 0, %s96
      %s98 = sphi 0, %s96
      %s99 = sphi 0, %s98
      %s113 = sphi 0, %s99
      %s117 = sphi 0, %s117
      %s119 = sphi 0, %s117
      %s120 = sphi 0, %s119
      %s134 = sphi 0, %s120
      %s138 = sphi 0, %s138
      %s140 = sphi 0, %s138
      %s141 = sphi 0, %s140
      %s155 = sphi 0, %s141
      %s159 = sphi 0, %s159
      %s161 = sphi 0, %s159
      %s162 = sphi 0, %s161
      %s176 = sphi 0, %s162
      %s182 = sphi 0, %s184
      %s185 = sphi 0, %s182
      %s186 = sphi 0, %s185
      %s202 = sphi 0, %s186
    $region4: #{tpu_custom_call.1} parent=1 // loop_header_branch
      %23 = sbr.rel (%p21) target = $region8
    $region5: #{tpu_custom_call.1} parent=1 // loop_body
      %s25 = ssub.s32 %s20, 1
      %s26 = ssub.s32 %s20, 2
      %s27 = sadd.s32 %s20, 1
      %s28 = ssub.s32 %s20, %s27
      %p29 = scmp.eq.s32.totalorder %s28, 0
      %s31 = sadd.s32 %s30, 1
      %s32 = scalar_select %p29, %s30, %s31
      %p35 = pneg %p29
      %p36 = scmp.eq.s32.totalorder %s20, 1
      %p37 = por %p35, %p36
      %p38 = scmp.ne.s32.totalorder %s30, %s33
      %p39 = scmp.eq.s32.totalorder %s20, 0
      %p40 = por %p38, %p39
      %p41 = scmp.ne.s32.totalorder %s30, %s33
      %p42 = scmp.eq.s32.totalorder %s25, 1
      %p43 = por %p41, %p42
      %p44 = scmp.ne.s32.totalorder %s33, %s34
      %p45 = scmp.eq.s32.totalorder %s25, 0
      %p46 = por %p44, %p45
      %p47 = scmp.ne.s32.totalorder %s33, %s34
      %p48 = scmp.eq.s32.totalorder %s26, 1
      %p49 = por %p47, %p48
      %p51 = scmp.ne.s32.totalorder %s34, %s50
      %p52 = scmp.eq.s32.totalorder %s26, 0
      %p53 = por %p51, %p52
      %s55 = sadd.s32 %s54, 1
      %p58 = scmp.eq.s32.totalorder %s20, 1
      %p59 = scmp.ne.s32.totalorder %s54, %s56
      %p60 = scmp.eq.s32.totalorder %s20, 0
      %p61 = por %p59, %p60
      %p62 = scmp.ne.s32.totalorder %s54, %s56
      %p63 = scmp.eq.s32.totalorder %s25, 1
      %p64 = por %p62, %p63
      %p65 = scmp.ne.s32.totalorder %s56, %s57
      %p66 = scmp.eq.s32.totalorder %s25, 0
      %p67 = por %p65, %p66
      %p68 = scmp.ne.s32.totalorder %s56, %s57
      %p69 = scmp.eq.s32.totalorder %s26, 1
      %p70 = por %p68, %p69
      %p72 = scmp.ne.s32.totalorder %s57, %s71
      %p73 = scmp.eq.s32.totalorder %s26, 0
      %p74 = por %p72, %p73
      %s76 = sadd.s32 %s75, 1
      %p79 = scmp.eq.s32.totalorder %s20, 1
      %p80 = scmp.ne.s32.totalorder %s75, %s77
      %p81 = scmp.eq.s32.totalorder %s20, 0
      %p82 = por %p80, %p81
      %p83 = scmp.ne.s32.totalorder %s75, %s77
      %p84 = scmp.eq.s32.totalorder %s25, 1
      %p85 = por %p83, %p84
      %p86 = scmp.ne.s32.totalorder %s77, %s78
      %p87 = scmp.eq.s32.totalorder %s25, 0
      %p88 = por %p86, %p87
      %p89 = scmp.ne.s32.totalorder %s77, %s78
      %p90 = scmp.eq.s32.totalorder %s26, 1
      %p91 = por %p89, %p90
      %p93 = scmp.ne.s32.totalorder %s78, %s92
      %p94 = scmp.eq.s32.totalorder %s26, 0
      %p95 = por %p93, %p94
      %s97 = sadd.s32 %s96, 1
      %p100 = scmp.eq.s32.totalorder %s20, 1
      %p101 = scmp.ne.s32.totalorder %s96, %s98
      %p102 = scmp.eq.s32.totalorder %s20, 0
      %p103 = por %p101, %p102
      %p104 = scmp.ne.s32.totalorder %s96, %s98
      %p105 = scmp.eq.s32.totalorder %s25, 1
      %p106 = por %p104, %p105
      %p107 = scmp.ne.s32.totalorder %s98, %s99
      %p108 = scmp.eq.s32.totalorder %s25, 0
      %p109 = por %p107, %p108
      %p110 = scmp.ne.s32.totalorder %s98, %s99
      %p111 = scmp.eq.s32.totalorder %s26, 1
      %p112 = por %p110, %p111
      %p114 = scmp.ne.s32.totalorder %s99, %s113
      %p115 = scmp.eq.s32.totalorder %s26, 0
      %p116 = por %p114, %p115
      %s118 = sadd.s32 %s117, 1
      %p121 = scmp.eq.s32.totalorder %s20, 1
      %p122 = scmp.ne.s32.totalorder %s117, %s119
      %p123 = scmp.eq.s32.totalorder %s20, 0
      %p124 = por %p122, %p123
      %p125 = scmp.ne.s32.totalorder %s117, %s119
      %p126 = scmp.eq.s32.totalorder %s25, 1
      %p127 = por %p125, %p126
      %p128 = scmp.ne.s32.totalorder %s119, %s120
      %p129 = scmp.eq.s32.totalorder %s25, 0
      %p130 = por %p128, %p129
      %p131 = scmp.ne.s32.totalorder %s119, %s120
      %p132 = scmp.eq.s32.totalorder %s26, 1
      %p133 = por %p131, %p132
      %p135 = scmp.ne.s32.totalorder %s120, %s134
      %p136 = scmp.eq.s32.totalorder %s26, 0
      %p137 = por %p135, %p136
      %s139 = sadd.s32 %s138, 1
      %p142 = scmp.eq.s32.totalorder %s20, 1
      %p143 = scmp.ne.s32.totalorder %s138, %s140
      %p144 = scmp.eq.s32.totalorder %s20, 0
      %p145 = por %p143, %p144
      %p146 = scmp.ne.s32.totalorder %s138, %s140
      %p147 = scmp.eq.s32.totalorder %s25, 1
      %p148 = por %p146, %p147
      %p149 = scmp.ne.s32.totalorder %s140, %s141
      %p150 = scmp.eq.s32.totalorder %s25, 0
      %p151 = por %p149, %p150
      %p152 = scmp.ne.s32.totalorder %s140, %s141
      %p153 = scmp.eq.s32.totalorder %s26, 1
      %p154 = por %p152, %p153
      %p156 = scmp.ne.s32.totalorder %s141, %s155
      %p157 = scmp.eq.s32.totalorder %s26, 0
      %p158 = por %p156, %p157
      %s160 = sadd.s32 %s159, 1
      %p163 = scmp.eq.s32.totalorder %s20, 1
      %p164 = scmp.ne.s32.totalorder %s159, %s161
      %p165 = scmp.eq.s32.totalorder %s20, 0
      %p166 = por %p164, %p165
      %p167 = scmp.ne.s32.totalorder %s159, %s161
      %p168 = scmp.eq.s32.totalorder %s25, 1
      %p169 = por %p167, %p168
      %p170 = scmp.ne.s32.totalorder %s161, %s162
      %p171 = scmp.eq.s32.totalorder %s25, 0
      %p172 = por %p170, %p171
      %p173 = scmp.ne.s32.totalorder %s161, %s162
      %p174 = scmp.eq.s32.totalorder %s26, 1
      %p175 = por %p173, %p174
      %p177 = scmp.ne.s32.totalorder %s162, %s176
      %p178 = scmp.eq.s32.totalorder %s26, 0
      %p179 = por %p177, %p178
      %s180 = ssub.s32 %s20, %s27
      %p181 = scmp.eq.s32.totalorder %s180, 0
      %s183 = sadd.s32 %s182, 1
      %s184 = scalar_select %p181, %s182, %s183
      %p187 = pneg %p181
      %p188 = scmp.eq.s32.totalorder %s20, 1
      %p189 = por %p187, %p188
      %p190 = scmp.ne.s32.totalorder %s182, %s185
      %p191 = scmp.eq.s32.totalorder %s20, 0
      %p192 = por %p190, %p191
      %p193 = scmp.ne.s32.totalorder %s182, %s185
      %p194 = scmp.eq.s32.totalorder %s25, 1
      %p195 = por %p193, %p194
      %p196 = scmp.ne.s32.totalorder %s185, %s186
      %p197 = scmp.eq.s32.totalorder %s25, 0
      %p198 = por %p196, %p197
      %p199 = scmp.ne.s32.totalorder %s185, %s186
      %p200 = scmp.eq.s32.totalorder %s26, 1
      %p201 = por %p199, %p200
      %p203 = scmp.ne.s32.totalorder %s186, %s202
      %p204 = scmp.eq.s32.totalorder %s26, 0
      %p205 = por %p203, %p204
      %p206 = scmp.le.s32.totalorder 1, %s20
      %p207 = scmp.lt.s32.totalorder %s20, 3
      %p208 = pnand %p206, %p207
      %p209 = pneg %p208
      // Predicated region
      $region9: #{tpu_custom_call.1} parent=5 // pred_check
        _
      $region10: #{tpu_custom_call.1} parent=5 // pred_check_branch
        %211 = sbr.rel (%p208) target = $region12
      $region11: #{tpu_custom_call.1} parent=5 // pred_region
        %s212 = ssub.s32 %s20, 1
        // Predicated region
        $region13: #{tpu_custom_call.1} parent=11 // pred_check
          %p213 = pneg %p67
        $region14: #{tpu_custom_call.1} parent=11 // pred_check_branch
          %215 = sbr.rel (%p213) target = $region16
        $region15: #{tpu_custom_call.1} parent=11 // pred_region
          %s217 = ssub.s32 2048, 2048
          %218 = vsyncadd [#allocation6], %s217
          %s219 = sshll.u32 [#allocation5], 4
          %s220 = int_to_ptr.vmem [resolvable:$true] %s219
          %225 = dma.hbm_to_vmem [thread:$0]  %s1, 2048, %s220, [#allocation6], 128, 128, 8
        $region16: #{tpu_custom_call.1} parent=11 // pred_fallthru
          _
        // Predicated region
        $region17: #{tpu_custom_call.1} parent=11 // pred_check
          %p226 = pneg %p88
        $region18: #{tpu_custom_call.1} parent=11 // pred_check_branch
          %228 = sbr.rel (%p226) target = $region20
        $region19: #{tpu_custom_call.1} parent=11 // pred_region
          _
        $region20: #{tpu_custom_call.1} parent=11 // pred_fallthru
          _
        // Predicated region
        $region21: #{tpu_custom_call.1} parent=11 // pred_check
          %p229 = pneg %p109
        $region22: #{tpu_custom_call.1} parent=11 // pred_check_branch
          %231 = sbr.rel (%p229) target = $region24
        $region23: #{tpu_custom_call.1} parent=11 // pred_region
          %s233 = ssub.s32 2048, 2048
          %234 = vsyncadd [#allocation6], %s233
          %s235 = sshll.u32 [#allocation7], 4
          %s236 = int_to_ptr.vmem [resolvable:$true] %s235
          %241 = dma.hbm_to_vmem [thread:$0]  %s3, 2048, %s236, [#allocation6], 64, 64, 4
        $region24: #{tpu_custom_call.1} parent=11 // pred_fallthru
          _
        // Predicated region
        $region25: #{tpu_custom_call.1} parent=11 // pred_check
          %p242 = pneg %p130
        $region26: #{tpu_custom_call.1} parent=11 // pred_check_branch
          %244 = sbr.rel (%p242) target = $region28
        $region27: #{tpu_custom_call.1} parent=11 // pred_region
          _
        $region28: #{tpu_custom_call.1} parent=11 // pred_fallthru
          _
        // Predicated region
        $region29: #{tpu_custom_call.1} parent=11 // pred_check
          %p245 = pneg %p151
        $region30: #{tpu_custom_call.1} parent=11 // pred_check_branch
          %247 = sbr.rel (%p245) target = $region32
        $region31: #{tpu_custom_call.1} parent=11 // pred_region
          _
        $region32: #{tpu_custom_call.1} parent=11 // pred_fallthru
          _
        // Predicated region
        $region33: #{tpu_custom_call.1} parent=11 // pred_check
          %p248 = pneg %p172
        $region34: #{tpu_custom_call.1} parent=11 // pred_check_branch
          %250 = sbr.rel (%p248) target = $region36
        $region35: #{tpu_custom_call.1} parent=11 // pred_region
          _
        $region36: #{tpu_custom_call.1} parent=11 // pred_fallthru
          _
      $region12: #{tpu_custom_call.1} parent=5 // pred_fallthru
        _
      %p251 = scmp.lt.s32.totalorder %s20, 2
      // Predicated region
      $region37: #{tpu_custom_call.1} parent=5 // pred_check
        %p252 = pneg %p251
      $region38: #{tpu_custom_call.1} parent=5 // pred_check_branch
        %254 = sbr.rel (%p252) target = $region40
      $region39: #{tpu_custom_call.1} parent=5 // pred_region
        // Predicated region
        $region41: #{tpu_custom_call.1} parent=39 // pred_check
          %p255 = pneg %p40
        $region42: #{tpu_custom_call.1} parent=39 // pred_check_branch
          %257 = sbr.rel (%p255) target = $region44
        $region43: #{tpu_custom_call.1} parent=39 // pred_region
          %s258 = sand.u32 %s30, 1
          %s259 = scalar_lea.sflag [#allocation3], %s258
          %s260 = sand.u32 %s30, 1
          %s261 = smul.addr %s260, 104
          %s262 = scalar_lea.vmem [#allocation2], %s261
          %s263 = smul.u32 13, %s20
          %s264 = ssub.s32 25, %s263
          %p265 = scmp.lt.s32.totalorder %s264, 13
          %s266 = scalar_select %p265, %s264, 13
          %s267 = smul.u32 128, %s266
          %s269 = ssub.s32 1664, %s267
          %270 = vsyncadd %s259, %s269
          %p271 = scmp.ne.s32.totalorder 0, %s267
          %s272 = smul.addr %s263, 128
          %s273 = scalar_lea.hbm %s0, %s272
          %s274 = smul.u32 8, %s266
          %s275 = sshll.u32 %s262, 4
          %s276 = int_to_ptr.vmem [resolvable:$true] %s275
          %s277 = sshll.u32 %s274, 4
          %281 = dma.hbm_to_vmem [thread:$0]  (%p271), %s273, %s277, %s276, %s259, 128, 128, 8
        $region44: #{tpu_custom_call.1} parent=39 // pred_fallthru
          _
      $region40: #{tpu_custom_call.1} parent=5 // pred_fallthru
        _
      %p282 = scmp.le.s32.totalorder 1, %s20
      %p283 = scmp.lt.s32.totalorder %s20, 3
      %p284 = pnand %p282, %p283
      %p285 = pneg %p284
      // Predicated region
      $region45: #{tpu_custom_call.1} parent=5 // pred_check
        _
      $region46: #{tpu_custom_call.1} parent=5 // pred_check_branch
        %287 = sbr.rel (%p284) target = $region48
      $region47: #{tpu_custom_call.1} parent=5 // pred_region
        %s288 = ssub.s32 %s20, 1
        %s289 = sand.u32 %s33, 1
        %s290 = scalar_lea.sflag [#allocation3], %s289
        %s291 = sand.u32 %s33, 1
        %s292 = smul.addr %s291, 104
        %s293 = scalar_lea.vmem [#allocation2], %s292
        // Predicated region
        $region49: #{tpu_custom_call.1} parent=47 // pred_check
          %p294 = pneg %p46
        $region50: #{tpu_custom_call.1} parent=47 // pred_check_branch
          %296 = sbr.rel (%p294) target = $region52
        $region51: #{tpu_custom_call.1} parent=47 // pred_region
          %297 = dma.done %s290, 1664
        $region52: #{tpu_custom_call.1} parent=47 // pred_fallthru
          _
        // Predicated region
        $region53: #{tpu_custom_call.1} parent=47 // pred_check
          %p298 = pneg %p67
        $region54: #{tpu_custom_call.1} parent=47 // pred_check_branch
          %300 = sbr.rel (%p298) target = $region56
        $region55: #{tpu_custom_call.1} parent=47 // pred_region
          %301 = dma.done [#allocation6], 2048
        $region56: #{tpu_custom_call.1} parent=47 // pred_fallthru
          _
        // Predicated region
        $region57: #{tpu_custom_call.1} parent=47 // pred_check
          %p302 = pneg %p109
        $region58: #{tpu_custom_call.1} parent=47 // pred_check_branch
          %304 = sbr.rel (%p302) target = $region60
        $region59: #{tpu_custom_call.1} parent=47 // pred_region
          %305 = dma.done [#allocation6], 2048
        $region60: #{tpu_custom_call.1} parent=47 // pred_fallthru
          _
        %s306 = sand.u32 %s33, 1
        %s307 = scalar_lea.sflag [#allocation3], %s306
        %s308 = sand.u32 %s33, 1
        %s309 = smul.addr %s308, 104
        %s310 = scalar_lea.vmem [#allocation2], %s309
        %p311 = pneg %p46
        %p312 = pneg %p43
        %p313 = pneg %p67
        %p314 = pneg %p64
        %p315 = pneg %p88
        %p316 = pneg %p85
        %p317 = pneg %p109
        %p318 = pneg %p106
        %p319 = pneg %p130
        %p320 = pneg %p127
        %p321 = pneg %p151
        %p322 = pneg %p148
        %p323 = pneg %p172
        %p324 = pneg %p169
        %p325 = pneg %p198
        %p326 = pneg %p195
        %s327 = sand.u32 %s185, 1
        %s328 = scalar_lea.sflag [#allocation4], %s327
        %s329 = sand.u32 %s185, 1
        %s330 = smul.addr %s329, 104
        %s331 = scalar_lea.vmem [#allocation8], %s330
        %s332 = smul.u32 13, %s25
        %s333 = ssub.s32 25, %s332
        %p334 = scmp.lt.s32.totalorder %s333, 13
        %s335 = scalar_select %p334, %s333, 13
        %s336 = smul.u32 128, %s335
        %s337 = smul.u32 13, %s25
        %s338 = ssub.s32 25, %s337
        %p339 = scmp.lt.s32.totalorder %s338, 13
        %s340 = scalar_select %p339, %s338, 13
        %s341 = smul.u32 128, %s340
        %v343 = vld [vmem:[%s293] sm:$0xff]
        %v344 = vld [vmem:[%s293 + $0x8] sm:$0xff]
        %v345 = vld [vmem:[%s293 + $0x10] sm:$0xff]
        %v346 = vld [vmem:[%s293 + $0x18] sm:$0xff]
        %v347 = vld [vmem:[%s293 + $0x20] sm:$0xff]
        %v348 = vld [vmem:[%s293 + $0x28] sm:$0xff]
        %v349 = vld [vmem:[%s293 + $0x30] sm:$0xff]
        %v350 = vld [vmem:[%s293 + $0x38] sm:$0xff]
        %v351 = vld [vmem:[%s293 + $0x40] sm:$0xff]
        %v352 = vld [vmem:[%s293 + $0x48] sm:$0xff]
        %v353 = vld [vmem:[%s293 + $0x50] sm:$0xff]
        %v354 = vld [vmem:[%s293 + $0x58] sm:$0xff]
        %v355 = vld [vmem:[%s293 + $0x60] sm:$0xff]
        %v356 = vpack.c.bf16 %v344, %v343
        %v357 = vpack.c.bf16 %v346, %v345
        %v358 = vpack.c.bf16 %v348, %v347
        %v359 = vpack.c.bf16 %v350, %v349
        %v360 = vpack.c.bf16 %v352, %v351
        %v361 = vpack.c.bf16 %v354, %v353
        %v362 = vpack.c.bf16 %v355, %v355
        %v363 = vld [vmem:[#allocation5] sm:$0xff]
        %v364 = vld [vmem:[#allocation5 + $0x8] sm:$0xff]
        %v365 = vld [vmem:[#allocation5 + $0x10] sm:$0xff]
        %v366 = vld [vmem:[#allocation5 + $0x18] sm:$0xff]
        %v367 = vld [vmem:[#allocation5 + $0x20] sm:$0xff]
        %v368 = vld [vmem:[#allocation5 + $0x28] sm:$0xff]
        %v369 = vld [vmem:[#allocation5 + $0x30] sm:$0xff]
        %v370 = vld [vmem:[#allocation5 + $0x38] sm:$0xff]
        %v371 = vld [vmem:[#allocation5 + $0x40] sm:$0xff]
        %v372 = vld [vmem:[#allocation5 + $0x48] sm:$0xff]
        %v373 = vld [vmem:[#allocation5 + $0x50] sm:$0xff]
        %v374 = vld [vmem:[#allocation5 + $0x58] sm:$0xff]
        %v375 = vld [vmem:[#allocation5 + $0x60] sm:$0xff]
        %v376 = vld [vmem:[#allocation5 + $0x68] sm:$0xff]
        %v377 = vld [vmem:[#allocation5 + $0x70] sm:$0xff]
        %v378 = vld [vmem:[#allocation5 + $0x78] sm:$0xff]
        %v379 = vld [vmem:[%s2] sm:$0x3]
        %v381 = vlaneseq
        %v382 = vshrl.u32 %v381, 7
        %v383 = vsub.s32 0, %v382
        %v384 = vrot.slane %v379, %v383
        %v385 = vlaneseq
        %v386 = vshrl.u32 %v385, 7
        %v387 = vsub.s32 1, %v386
        %v388 = vrot.slane %v379, %v387
        %v407 = vunpack.c.l.b16 %v363
        %v408 = vunpack.c.h.b16 %v363
        %v409 = vunpack.c.l.b16 %v364
        %v410 = vunpack.c.h.b16 %v364
        %v411 = vunpack.c.l.b16 %v365
        %v412 = vunpack.c.h.b16 %v365
        %v413 = vunpack.c.l.b16 %v366
        %v414 = vunpack.c.h.b16 %v366
        %v415 = vunpack.c.l.b16 %v367
        %v416 = vunpack.c.h.b16 %v367
        %v417 = vunpack.c.l.b16 %v368
        %v418 = vunpack.c.h.b16 %v368
        %v419 = vunpack.c.l.b16 %v369
        %v420 = vunpack.c.h.b16 %v369
        %v421 = vunpack.c.l.b16 %v370
        %v422 = vunpack.c.h.b16 %v370
        %v423 = vunpack.c.l.b16 %v371
        %v424 = vunpack.c.h.b16 %v371
        %v425 = vunpack.c.l.b16 %v372
        %v426 = vunpack.c.h.b16 %v372
        %v427 = vunpack.c.l.b16 %v373
        %v428 = vunpack.c.h.b16 %v373
        %v429 = vunpack.c.l.b16 %v374
        %v430 = vunpack.c.h.b16 %v374
        %v431 = vunpack.c.l.b16 %v375
        %v432 = vunpack.c.h.b16 %v375
        %v433 = vunpack.c.l.b16 %v376
        %v434 = vunpack.c.h.b16 %v376
        %v435 = vunpack.c.l.b16 %v377
        %v436 = vunpack.c.h.b16 %v377
        %v437 = vunpack.c.l.b16 %v378
        %v438 = vunpack.c.h.b16 %v378
        %v439 = vpack.c.b16 %v409, %v407
        %v440 = vpack.c.b16 %v410, %v408
        %v441 = vpack.c.b16 %v413, %v411
        %v442 = vpack.c.b16 %v414, %v412
        %v443 = vpack.c.b16 %v417, %v415
        %v444 = vpack.c.b16 %v418, %v416
        %v445 = vpack.c.b16 %v421, %v419
        %v446 = vpack.c.b16 %v422, %v420
        %v447 = vpack.c.b16 %v425, %v423
        %v448 = vpack.c.b16 %v426, %v424
        %v449 = vpack.c.b16 %v429, %v427
        %v450 = vpack.c.b16 %v430, %v428
        %v451 = vpack.c.b16 %v433, %v431
        %v452 = vpack.c.b16 %v434, %v432
        %v453 = vpack.c.b16 %v437, %v435
        %v454 = vpack.c.b16 %v438, %v436
        %471 = vmatprep.subr.bf16.mxu0 %v440
        %472 = vmatpush1.bf16.msra.mxu0 %v439
        %473 = vmatprep.subr.bf16.mxu0 %v442
        %474 = vmatpush1.bf16.msra.mxu0 %v441
        %475 = vmatprep.subr.bf16.mxu0 %v444
        %476 = vmatpush1.bf16.msra.mxu0 %v443
        %477 = vmatprep.subr.bf16.mxu0 %v446
        %478 = vmatpush1.bf16.msra.mxu0 %v445
        %479 = vmatprep.subr.bf16.mxu0 %v448
        %480 = vmatpush1.bf16.msra.mxu0 %v447
        %481 = vmatprep.subr.bf16.mxu0 %v450
        %482 = vmatpush1.bf16.msra.mxu0 %v449
        %483 = vmatprep.subr.bf16.mxu0 %v452
        %484 = vmatpush1.bf16.msra.mxu0 %v451
        %485 = vmatprep.subr.bf16.mxu0 %v454
        %486 = vmatpush1.bf16.msra.mxu0 %v453
        %487 = vmatprep.subr.bf16.mxu0 0
        %488 = vmatpush1.bf16.msra.mxu0 0
        %489 = vmatprep.subr.bf16.mxu0 0
        %490 = vmatpush1.bf16.msra.mxu0 0
        %491 = vmatprep.subr.bf16.mxu0 0
        %492 = vmatpush1.bf16.msra.mxu0 0
        %493 = vmatprep.subr.bf16.mxu0 0
        %494 = vmatpush1.bf16.msra.mxu0 0
        %495 = vmatprep.subr.bf16.mxu0 0
        %496 = vmatpush1.bf16.msra.mxu0 0
        %497 = vmatprep.subr.bf16.mxu0 0
        %498 = vmatpush1.bf16.msra.mxu0 0
        %499 = vmatprep.subr.bf16.mxu0 0
        %500 = vmatpush1.bf16.msra.mxu0 0
        %501 = vmatprep.subr.bf16.mxu0 0
        %502 = vmatpush1.bf16.msra.mxu0 0
        %503 = vmatprep.mubr.bf16.mxu0 0
        %504 = vmatmul.mubr.bf16.gmra.mrb[0].mxu0 %v356
        %v505 = vpop.f32.mrb[0].mxu0
        %v506 = vadd.f32 %v384, %v505
        %v507 = vpop.f32.mrb[0].mxu0
        %v508 = vadd.f32 %v388, %v507
        %v509 = vpop.f32.mrb[0].mxu0
        %v510 = vadd.f32 %v384, %v509
        %v511 = vpop.f32.mrb[0].mxu0
        %v512 = vadd.f32 %v388, %v511
        %513 = vmatprep.mubr.bf16.mxu0 0
        %514 = vmatmul.mubr.bf16.gmra.mrb[0].mxu0 %v357
        %v515 = vpop.f32.mrb[0].mxu0
        %v516 = vadd.f32 %v384, %v515
        %v517 = vpop.f32.mrb[0].mxu0
        %v518 = vadd.f32 %v388, %v517
        %v519 = vpop.f32.mrb[0].mxu0
        %v520 = vadd.f32 %v384, %v519
        %v521 = vpop.f32.mrb[0].mxu0
        %v522 = vadd.f32 %v388, %v521
        %523 = vmatprep.mubr.bf16.mxu0 0
        %524 = vmatmul.mubr.bf16.gmra.mrb[0].mxu0 %v358
        %v525 = vpop.f32.mrb[0].mxu0
        %v526 = vadd.f32 %v384, %v525
        %v527 = vpop.f32.mrb[0].mxu0
        %v528 = vadd.f32 %v388, %v527
        %v529 = vpop.f32.mrb[0].mxu0
        %v530 = vadd.f32 %v384, %v529
        %v531 = vpop.f32.mrb[0].mxu0
        %v532 = vadd.f32 %v388, %v531
        %533 = vmatprep.mubr.bf16.mxu0 0
        %534 = vmatmul.mubr.bf16.gmra.mrb[0].mxu0 %v359
        %v535 = vpop.f32.mrb[0].mxu0
        %v536 = vadd.f32 %v384, %v535
        %v537 = vpop.f32.mrb[0].mxu0
        %v538 = vadd.f32 %v388, %v537
        %v539 = vpop.f32.mrb[0].mxu0
        %v540 = vadd.f32 %v384, %v539
        %v541 = vpop.f32.mrb[0].mxu0
        %v542 = vadd.f32 %v388, %v541
        %543 = vmatprep.mubr.bf16.mxu0 0
        %544 = vmatmul.mubr.bf16.gmra.mrb[0].mxu0 %v360
        %v545 = vpop.f32.mrb[0].mxu0
        %v546 = vadd.f32 %v384, %v545
        %v547 = vpop.f32.mrb[0].mxu0
        %v548 = vadd.f32 %v388, %v547
        %v549 = vpop.f32.mrb[0].mxu0
        %v550 = vadd.f32 %v384, %v549
        %v551 = vpop.f32.mrb[0].mxu0
        %v552 = vadd.f32 %v388, %v551
        %553 = vmatprep.mubr.bf16.mxu0 0
        %554 = vmatmul.mubr.bf16.gmra.mrb[0].mxu0 %v361
        %v555 = vpop.f32.mrb[0].mxu0
        %v556 = vadd.f32 %v384, %v555
        %v557 = vpop.f32.mrb[0].mxu0
        %v558 = vadd.f32 %v388, %v557
        %v559 = vpop.f32.mrb[0].mxu0
        %v560 = vadd.f32 %v384, %v559
        %v561 = vpop.f32.mrb[0].mxu0
        %v562 = vadd.f32 %v388, %v561
        %563 = vmatprep.mubr.bf16.mxu0 0
        %564 = vmatmul.mubr.bf16.gmra.mrb[0].mxu0 %v362
        %v565 = vpop.f32.mrb[0].mxu0
        %v566 = vadd.f32 %v384, %v565
        %v567 = vpop.f32.mrb[0].mxu0
        %v568 = vadd.f32 %v388, %v567
        %v569 = vpop.f32.mrb[0].mxu0
        %v570 = vpop.f32.mrb[0].mxu0
        %571 = vdwg.mxu0
        %v572 = vpack.c.bf16 %v510, %v506
        %v573 = vpack.c.bf16 %v512, %v508
        %v574 = vpack.c.bf16 %v520, %v516
        %v575 = vpack.c.bf16 %v522, %v518
        %v576 = vpack.c.bf16 %v530, %v526
        %v577 = vpack.c.bf16 %v532, %v528
        %v578 = vpack.c.bf16 %v540, %v536
        %v579 = vpack.c.bf16 %v542, %v538
        %v580 = vpack.c.bf16 %v550, %v546
        %v581 = vpack.c.bf16 %v552, %v548
        %v582 = vpack.c.bf16 %v560, %v556
        %v583 = vpack.c.bf16 %v562, %v558
        %v584 = vpack.c.bf16 %v566, %v566
        %v585 = vpack.c.bf16 %v568, %v568
        %v586 = vmax.bf16 %v572, 0
        %v587 = vmax.bf16 %v573, 0
        %v588 = vmax.bf16 %v574, 0
        %v589 = vmax.bf16 %v575, 0
        %v590 = vmax.bf16 %v576, 0
        %v591 = vmax.bf16 %v577, 0
        %v592 = vmax.bf16 %v578, 0
        %v593 = vmax.bf16 %v579, 0
        %v594 = vmax.bf16 %v580, 0
        %v595 = vmax.bf16 %v581, 0
        %v596 = vmax.bf16 %v582, 0
        %v597 = vmax.bf16 %v583, 0
        %v598 = vmax.bf16 %v584, 0
        %v599 = vmax.bf16 %v585, 0
        %v600 = vld [vmem:[#allocation7] sm:$0xf]
        %v601 = vld [vmem:[#allocation7 + $0x4] sm:$0xf]
        %v602 = vld [vmem:[#allocation7 + $0x8] sm:$0xf]
        %v603 = vld [vmem:[#allocation7 + $0xc] sm:$0xf]
        %v604 = vld [vmem:[#allocation7 + $0x10] sm:$0xf]
        %v605 = vld [vmem:[#allocation7 + $0x14] sm:$0xf]
        %v606 = vld [vmem:[#allocation7 + $0x18] sm:$0xf]
        %v607 = vld [vmem:[#allocation7 + $0x1c] sm:$0xf]
        %v608 = vld [vmem:[#allocation7 + $0x20] sm:$0xf]
        %v609 = vld [vmem:[#allocation7 + $0x24] sm:$0xf]
        %v610 = vld [vmem:[#allocation7 + $0x28] sm:$0xf]
        %v611 = vld [vmem:[#allocation7 + $0x2c] sm:$0xf]
        %v612 = vld [vmem:[#allocation7 + $0x30] sm:$0xf]
        %v613 = vld [vmem:[#allocation7 + $0x34] sm:$0xf]
        %v614 = vld [vmem:[#allocation7 + $0x38] sm:$0xf]
        %v615 = vld [vmem:[#allocation7 + $0x3c] sm:$0xf]
        %v616 = vld [vmem:[#allocation7 + $0x40] sm:$0xf]
        %v617 = vld [vmem:[#allocation7 + $0x44] sm:$0xf]
        %v618 = vld [vmem:[#allocation7 + $0x48] sm:$0xf]
        %v619 = vld [vmem:[#allocation7 + $0x4c] sm:$0xf]
        %v620 = vld [vmem:[#allocation7 + $0x50] sm:$0xf]
        %v621 = vld [vmem:[#allocation7 + $0x54] sm:$0xf]
        %v622 = vld [vmem:[#allocation7 + $0x58] sm:$0xf]
        %v623 = vld [vmem:[#allocation7 + $0x5c] sm:$0xf]
        %v624 = vld [vmem:[#allocation7 + $0x60] sm:$0xf]
        %v625 = vld [vmem:[#allocation7 + $0x64] sm:$0xf]
        %v626 = vld [vmem:[#allocation7 + $0x68] sm:$0xf]
        %v627 = vld [vmem:[#allocation7 + $0x6c] sm:$0xf]
        %v628 = vld [vmem:[#allocation7 + $0x70] sm:$0xf]
        %v629 = vld [vmem:[#allocation7 + $0x74] sm:$0xf]
        %v630 = vld [vmem:[#allocation7 + $0x78] sm:$0xf]
        %v631 = vld [vmem:[#allocation7 + $0x7c] sm:$0xf]
        %v632 = vld [vmem:[%s4] sm:$0x1]
        %v634 = vlaneseq
        %v635 = vshrl.u32 %v634, 7
        %v636 = vsub.s32 0, %v635
        %v637 = vrot.slane %v632, %v636
        %v671 = vunpack.c.l.b16 %v600
        %v672 = vunpack.c.l.b16 %v601
        %v673 = vunpack.c.l.b16 %v602
        %v674 = vunpack.c.l.b16 %v603
        %v675 = vunpack.c.l.b16 %v604
        %v676 = vunpack.c.l.b16 %v605
        %v677 = vunpack.c.l.b16 %v606
        %v678 = vunpack.c.l.b16 %v607
        %v679 = vunpack.c.l.b16 %v608
        %v680 = vunpack.c.l.b16 %v609
        %v681 = vunpack.c.l.b16 %v610
        %v682 = vunpack.c.l.b16 %v611
        %v683 = vunpack.c.l.b16 %v612
        %v684 = vunpack.c.l.b16 %v613
        %v685 = vunpack.c.l.b16 %v614
        %v686 = vunpack.c.l.b16 %v615
        %v687 = vunpack.c.l.b16 %v616
        %v688 = vunpack.c.l.b16 %v617
        %v689 = vunpack.c.l.b16 %v618
        %v690 = vunpack.c.l.b16 %v619
        %v691 = vunpack.c.l.b16 %v620
        %v692 = vunpack.c.l.b16 %v621
        %v693 = vunpack.c.l.b16 %v622
        %v694 = vunpack.c.l.b16 %v623
        %v695 = vunpack.c.l.b16 %v624
        %v696 = vunpack.c.l.b16 %v625
        %v697 = vunpack.c.l.b16 %v626
        %v698 = vunpack.c.l.b16 %v627
        %v699 = vunpack.c.l.b16 %v628
        %v700 = vunpack.c.l.b16 %v629
        %v701 = vunpack.c.l.b16 %v630
        %v702 = vunpack.c.l.b16 %v631
        %v703 = vpack.c.b16 %v672, %v671
        %v704 = vpack.c.b16 %v674, %v673
        %v705 = vpack.c.b16 %v676, %v675
        %v706 = vpack.c.b16 %v678, %v677
        %v707 = vpack.c.b16 %v680, %v679
        %v708 = vpack.c.b16 %v682, %v681
        %v709 = vpack.c.b16 %v684, %v683
        %v710 = vpack.c.b16 %v686, %v685
        %v711 = vpack.c.b16 %v688, %v687
        %v712 = vpack.c.b16 %v690, %v689
        %v713 = vpack.c.b16 %v692, %v691
        %v714 = vpack.c.b16 %v694, %v693
        %v715 = vpack.c.b16 %v696, %v695
        %v716 = vpack.c.b16 %v698, %v697
        %v717 = vpack.c.b16 %v700, %v699
        %v718 = vpack.c.b16 %v702, %v701
        %735 = vmatprep.subr.bf16.mxu0 0
        %736 = vmatpush1.bf16.msra.mxu0 %v703
        %737 = vmatprep.subr.bf16.mxu0 0
        %738 = vmatpush1.bf16.msra.mxu0 %v704
        %739 = vmatprep.subr.bf16.mxu0 0
        %740 = vmatpush1.bf16.msra.mxu0 %v705
        %741 = vmatprep.subr.bf16.mxu0 0
        %742 = vmatpush1.bf16.msra.mxu0 %v706
        %743 = vmatprep.subr.bf16.mxu0 0
        %744 = vmatpush1.bf16.msra.mxu0 %v707
        %745 = vmatprep.subr.bf16.mxu0 0
        %746 = vmatpush1.bf16.msra.mxu0 %v708
        %747 = vmatprep.subr.bf16.mxu0 0
        %748 = vmatpush1.bf16.msra.mxu0 %v709
        %749 = vmatprep.subr.bf16.mxu0 0
        %750 = vmatpush1.bf16.msra.mxu0 %v710
        %751 = vmatprep.subr.bf16.mxu0 0
        %752 = vmatpush1.bf16.msra.mxu0 %v711
        %753 = vmatprep.subr.bf16.mxu0 0
        %754 = vmatpush1.bf16.msra.mxu0 %v712
        %755 = vmatprep.subr.bf16.mxu0 0
        %756 = vmatpush1.bf16.msra.mxu0 %v713
        %757 = vmatprep.subr.bf16.mxu0 0
        %758 = vmatpush1.bf16.msra.mxu0 %v714
        %759 = vmatprep.subr.bf16.mxu0 0
        %760 = vmatpush1.bf16.msra.mxu0 %v715
        %761 = vmatprep.subr.bf16.mxu0 0
        %762 = vmatpush1.bf16.msra.mxu0 %v716
        %763 = vmatprep.subr.bf16.mxu0 0
        %764 = vmatpush1.bf16.msra.mxu0 %v717
        %765 = vmatprep.subr.bf16.mxu0 0
        %766 = vmatpush1.bf16.msra.mxu0 %v718
        %767 = vmatprep.mubr.bf16.mxu0 %v587
        %768 = vmatmul.mubr.bf16.gmra.mrb[0].mxu0 %v586
        %v769 = vpop.f32.mrb[0].mxu0
        %v770 = vadd.f32 %v637, %v769
        %v771 = vpop.f32.mrb[0].mxu0
        %v772 = vpop.f32.mrb[0].mxu0
        %v773 = vadd.f32 %v637, %v772
        %v774 = vpop.f32.mrb[0].mxu0
        %775 = vmatprep.mubr.bf16.mxu0 %v589
        %776 = vmatmul.mubr.bf16.gmra.mrb[0].mxu0 %v588
        %v777 = vpop.f32.mrb[0].mxu0
        %v778 = vadd.f32 %v637, %v777
        %v779 = vpop.f32.mrb[0].mxu0
        %v780 = vpop.f32.mrb[0].mxu0
        %v781 = vadd.f32 %v637, %v780
        %v782 = vpop.f32.mrb[0].mxu0
        %783 = vmatprep.mubr.bf16.mxu0 %v591
        %784 = vmatmul.mubr.bf16.gmra.mrb[0].mxu0 %v590
        %v785 = vpop.f32.mrb[0].mxu0
        %v786 = vadd.f32 %v637, %v785
        %v787 = vpop.f32.mrb[0].mxu0
        %v788 = vpop.f32.mrb[0].mxu0
        %v789 = vadd.f32 %v637, %v788
        %v790 = vpop.f32.mrb[0].mxu0
        %791 = vmatprep.mubr.bf16.mxu0 %v593
        %792 = vmatmul.mubr.bf16.gmra.mrb[0].mxu0 %v592
        %v793 = vpop.f32.mrb[0].mxu0
        %v794 = vadd.f32 %v637, %v793
        %v795 = vpop.f32.mrb[0].mxu0
        %v796 = vpop.f32.mrb[0].mxu0
        %v797 = vadd.f32 %v637, %v796
        %v798 = vpop.f32.mrb[0].mxu0
        %799 = vmatprep.mubr.bf16.mxu0 %v595
        %800 = vmatmul.mubr.bf16.gmra.mrb[0].mxu0 %v594
        %v801 = vpop.f32.mrb[0].mxu0
        %v802 = vadd.f32 %v637, %v801
        %v803 = vpop.f32.mrb[0].mxu0
        %v804 = vpop.f32.mrb[0].mxu0
        %v805 = vadd.f32 %v637, %v804
        %v806 = vpop.f32.mrb[0].mxu0
        %807 = vmatprep.mubr.bf16.mxu0 %v597
        %808 = vmatmul.mubr.bf16.gmra.mrb[0].mxu0 %v596
        %v809 = vpop.f32.mrb[0].mxu0
        %v810 = vadd.f32 %v637, %v809
        %v811 = vpop.f32.mrb[0].mxu0
        %v812 = vpop.f32.mrb[0].mxu0
        %v813 = vadd.f32 %v637, %v812
        %v814 = vpop.f32.mrb[0].mxu0
        %815 = vmatprep.mubr.bf16.mxu0 %v599
        %816 = vmatmul.mubr.bf16.gmra.mrb[0].mxu0 %v598
        %v817 = vpop.f32.mrb[0].mxu0
        %v818 = vadd.f32 %v637, %v817
        %v819 = vpop.f32.mrb[0].mxu0
        %v820 = vpop.f32.mrb[0].mxu0
        %v821 = vpop.f32.mrb[0].mxu0
        %822 = vdwg.mxu0
        %v823 = vadd.f32 %v343, %v770
        %v824 = vadd.f32 %v344, %v773
        %v825 = vadd.f32 %v345, %v778
        %v826 = vadd.f32 %v346, %v781
        %v827 = vadd.f32 %v347, %v786
        %v828 = vadd.f32 %v348, %v789
        %v829 = vadd.f32 %v349, %v794
        %v830 = vadd.f32 %v350, %v797
        %v831 = vadd.f32 %v351, %v802
        %v832 = vadd.f32 %v352, %v805
        %v833 = vadd.f32 %v353, %v810
        %v834 = vadd.f32 %v354, %v813
        %v835 = vadd.f32 %v355, %v818
        %836 = vadd.xlane.f32.xlu0 %v823
        %v837 = vpop.xlane.xlu0 %836
        %838 = vadd.xlane.f32.xlu0 %v824
        %v839 = vpop.xlane.xlu0 %838
        %840 = vadd.xlane.f32.xlu0 %v825
        %v841 = vpop.xlane.xlu0 %840
        %842 = vadd.xlane.f32.xlu0 %v826
        %v843 = vpop.xlane.xlu0 %842
        %844 = vadd.xlane.f32.xlu0 %v827
        %v845 = vpop.xlane.xlu0 %844
        %846 = vadd.xlane.f32.xlu0 %v828
        %v847 = vpop.xlane.xlu0 %846
        %848 = vadd.xlane.f32.xlu0 %v829
        %v849 = vpop.xlane.xlu0 %848
        %850 = vadd.xlane.f32.xlu0 %v830
        %v851 = vpop.xlane.xlu0 %850
        %852 = vadd.xlane.f32.xlu0 %v831
        %v853 = vpop.xlane.xlu0 %852
        %854 = vadd.xlane.f32.xlu0 %v832
        %v855 = vpop.xlane.xlu0 %854
        %856 = vadd.xlane.f32.xlu0 %v833
        %v857 = vpop.xlane.xlu0 %856
        %858 = vadd.xlane.f32.xlu0 %v834
        %v859 = vpop.xlane.xlu0 %858
        %860 = vadd.xlane.f32.xlu0 %v835
        %v861 = vpop.xlane.xlu0 %860
        %v862 = vrcp.pop 128.0
        %v863 = vmul.f32 %v837, %v862
        %v864 = vmul.f32 %v839, %v862
        %v865 = vmul.f32 %v841, %v862
        %v866 = vmul.f32 %v843, %v862
        %v867 = vmul.f32 %v845, %v862
        %v868 = vmul.f32 %v847, %v862
        %v869 = vmul.f32 %v849, %v862
        %v870 = vmul.f32 %v851, %v862
        %v871 = vmul.f32 %v853, %v862
        %v872 = vmul.f32 %v855, %v862
        %v873 = vmul.f32 %v857, %v862
        %v874 = vmul.f32 %v859, %v862
        %v875 = vmul.f32 %v861, %v862
        %v876 = vsub.f32 %v823, %v863
        %v877 = vsub.f32 %v824, %v864
        %v878 = vsub.f32 %v825, %v865
        %v879 = vsub.f32 %v826, %v866
        %v880 = vsub.f32 %v827, %v867
        %v881 = vsub.f32 %v828, %v868
        %v882 = vsub.f32 %v829, %v869
        %v883 = vsub.f32 %v830, %v870
        %v884 = vsub.f32 %v831, %v871
        %v885 = vsub.f32 %v832, %v872
        %v886 = vsub.f32 %v833, %v873
        %v887 = vsub.f32 %v834, %v874
        %v888 = vsub.f32 %v835, %v875
        %v889 = vmul.f32 %v876, %v876
        %v890 = vmul.f32 %v877, %v877
        %v891 = vmul.f32 %v878, %v878
        %v892 = vmul.f32 %v879, %v879
        %v893 = vmul.f32 %v880, %v880
        %v894 = vmul.f32 %v881, %v881
        %v895 = vmul.f32 %v882, %v882
        %v896 = vmul.f32 %v883, %v883
        %v897 = vmul.f32 %v884, %v884
        %v898 = vmul.f32 %v885, %v885
        %v899 = vmul.f32 %v886, %v886
        %v900 = vmul.f32 %v887, %v887
        %v901 = vmul.f32 %v888, %v888
        %902 = vadd.xlane.f32.xlu0 %v889
        %v903 = vpop.xlane.xlu0 %902
        %904 = vadd.xlane.f32.xlu0 %v890
        %v905 = vpop.xlane.xlu0 %904
        %906 = vadd.xlane.f32.xlu0 %v891
        %v907 = vpop.xlane.xlu0 %906
        %908 = vadd.xlane.f32.xlu0 %v892
        %v909 = vpop.xlane.xlu0 %908
        %910 = vadd.xlane.f32.xlu0 %v893
        %v911 = vpop.xlane.xlu0 %910
        %912 = vadd.xlane.f32.xlu0 %v894
        %v913 = vpop.xlane.xlu0 %912
        %914 = vadd.xlane.f32.xlu0 %v895
        %v915 = vpop.xlane.xlu0 %914
        %916 = vadd.xlane.f32.xlu0 %v896
        %v917 = vpop.xlane.xlu0 %916
        %918 = vadd.xlane.f32.xlu0 %v897
        %v919 = vpop.xlane.xlu0 %918
        %920 = vadd.xlane.f32.xlu0 %v898
        %v921 = vpop.xlane.xlu0 %920
        %922 = vadd.xlane.f32.xlu0 %v899
        %v923 = vpop.xlane.xlu0 %922
        %924 = vadd.xlane.f32.xlu0 %v900
        %v925 = vpop.xlane.xlu0 %924
        %926 = vadd.xlane.f32.xlu0 %v901
        %v927 = vpop.xlane.xlu0 %926
        %v928 = vmul.f32 %v903, %v862
        %v929 = vmul.f32 %v905, %v862
        %v930 = vmul.f32 %v907, %v862
        %v931 = vmul.f32 %v909, %v862
        %v932 = vmul.f32 %v911, %v862
        %v933 = vmul.f32 %v913, %v862
        %v934 = vmul.f32 %v915, %v862
        %v935 = vmul.f32 %v917, %v862
        %v936 = vmul.f32 %v919, %v862
        %v937 = vmul.f32 %v921, %v862
        %v938 = vmul.f32 %v923, %v862
        %v939 = vmul.f32 %v925, %v862
        %v940 = vmul.f32 %v927, %v862
        %v941 = vadd.f32 %v928, 1e-05
        %v942 = vadd.f32 %v929, 1e-05
        %v943 = vadd.f32 %v930, 1e-05
        %v944 = vadd.f32 %v931, 1e-05
        %v945 = vadd.f32 %v932, 1e-05
        %v946 = vadd.f32 %v933, 1e-05
        %v947 = vadd.f32 %v934, 1e-05
        %v948 = vadd.f32 %v935, 1e-05
        %v949 = vadd.f32 %v936, 1e-05
        %v950 = vadd.f32 %v937, 1e-05
        %v951 = vadd.f32 %v938, 1e-05
        %v952 = vadd.f32 %v939, 1e-05
        %v953 = vadd.f32 %v940, 1e-05
        %v954 = vrsqrt.pop %v941
        %v955 = vrsqrt.pop %v942
        %v956 = vrsqrt.pop %v943
        %v957 = vrsqrt.pop %v944
        %v958 = vrsqrt.pop %v945
        %v959 = vrsqrt.pop %v946
        %v960 = vrsqrt.pop %v947
        %v961 = vrsqrt.pop %v948
        %v962 = vrsqrt.pop %v949
        %v963 = vrsqrt.pop %v950
        %v964 = vrsqrt.pop %v951
        %v965 = vrsqrt.pop %v952
        %v966 = vrsqrt.pop %v953
        %v967 = vmul.f32 %v876, %v954
        %v968 = vmul.f32 %v877, %v955
        %v969 = vmul.f32 %v878, %v956
        %v970 = vmul.f32 %v879, %v957
        %v971 = vmul.f32 %v880, %v958
        %v972 = vmul.f32 %v881, %v959
        %v973 = vmul.f32 %v882, %v960
        %v974 = vmul.f32 %v883, %v961
        %v975 = vmul.f32 %v884, %v962
        %v976 = vmul.f32 %v885, %v963
        %v977 = vmul.f32 %v886, %v964
        %v978 = vmul.f32 %v887, %v965
        %v979 = vmul.f32 %v888, %v966
        %v980 = vld [vmem:[%s5] sm:$0x1]
        %v982 = vlaneseq
        %v983 = vshrl.u32 %v982, 7
        %v984 = vsub.s32 0, %v983
        %v985 = vrot.slane %v980, %v984
        %v987 = vmul.f32 %v967, %v985
        %v988 = vmul.f32 %v968, %v985
        %v989 = vmul.f32 %v969, %v985
        %v990 = vmul.f32 %v970, %v985
        %v991 = vmul.f32 %v971, %v985
        %v992 = vmul.f32 %v972, %v985
        %v993 = vmul.f32 %v973, %v985
        %v994 = vmul.f32 %v974, %v985
        %v995 = vmul.f32 %v975, %v985
        %v996 = vmul.f32 %v976, %v985
        %v997 = vmul.f32 %v977, %v985
        %v998 = vmul.f32 %v978, %v985
        %v999 = vmul.f32 %v979, %v985
        %v1000 = vld [vmem:[%s6] sm:$0x1]
        %v1002 = vlaneseq
        %v1003 = vshrl.u32 %v1002, 7
        %v1004 = vsub.s32 0, %v1003
        %v1005 = vrot.slane %v1000, %v1004
        %v1007 = vadd.f32 %v987, %v1005
        %v1008 = vadd.f32 %v988, %v1005
        %v1009 = vadd.f32 %v989, %v1005
        %v1010 = vadd.f32 %v990, %v1005
        %v1011 = vadd.f32 %v991, %v1005
        %v1012 = vadd.f32 %v992, %v1005
        %v1013 = vadd.f32 %v993, %v1005
        %v1014 = vadd.f32 %v994, %v1005
        %v1015 = vadd.f32 %v995, %v1005
        %v1016 = vadd.f32 %v996, %v1005
        %v1017 = vadd.f32 %v997, %v1005
        %v1018 = vadd.f32 %v998, %v1005
        %v1019 = vadd.f32 %v999, %v1005
        %1020 = vst [vmem:[%s331] sm:$0xff] %v1007
        %1021 = vst [vmem:[%s331 + $0x8] sm:$0xff] %v1008
        %1022 = vst [vmem:[%s331 + $0x10] sm:$0xff] %v1009
        %1023 = vst [vmem:[%s331 + $0x18] sm:$0xff] %v1010
        %1024 = vst [vmem:[%s331 + $0x20] sm:$0xff] %v1011
        %1025 = vst [vmem:[%s331 + $0x28] sm:$0xff] %v1012
        %1026 = vst [vmem:[%s331 + $0x30] sm:$0xff] %v1013
        %1027 = vst [vmem:[%s331 + $0x38] sm:$0xff] %v1014
        %1028 = vst [vmem:[%s331 + $0x40] sm:$0xff] %v1015
        %1029 = vst [vmem:[%s331 + $0x48] sm:$0xff] %v1016
        %1030 = vst [vmem:[%s331 + $0x50] sm:$0xff] %v1017
        %1031 = vst [vmem:[%s331 + $0x58] sm:$0xff] %v1018
        %1032 = vst [vmem:[%s331 + $0x60] sm:$0xff] %v1019
        %s1033 = sand.u32 %s185, 1
        %s1034 = scalar_lea.sflag [#allocation4], %s1033
        %s1035 = sand.u32 %s185, 1
        %s1036 = smul.addr %s1035, 104
        %s1037 = scalar_lea.vmem [#allocation8], %s1036
        // Predicated region
        $region61: #{tpu_custom_call.1} parent=47 // pred_check
          %p1038 = pneg %p195
        $region62: #{tpu_custom_call.1} parent=47 // pred_check_branch
          %1040 = sbr.rel (%p1038) target = $region64
        $region63: #{tpu_custom_call.1} parent=47 // pred_region
          %s1041 = smul.u32 13, %s25
          %s1042 = ssub.s32 25, %s1041
          %p1043 = scmp.lt.s32.totalorder %s1042, 13
          %s1044 = scalar_select %p1043, %s1042, 13
          %s1045 = smul.u32 128, %s1044
          %s1047 = ssub.s32 1664, %s1045
          %1048 = vsyncadd %s1034, %s1047
          %p1049 = scmp.ne.s32.totalorder 0, %s1045
          %s1050 = smul.addr %s1041, 128
          %s1051 = scalar_lea.hbm %s7, %s1050
          %s1052 = smul.u32 8, %s1044
          %s1053 = sshll.u32 %s1037, 4
          %s1054 = int_to_ptr.vmem [resolvable:$true] %s1053
          %s1055 = sshll.u32 %s1052, 4
          %1059 = dma.vmem_to_hbm [thread:$0]  (%p1049), %s1054, %s1055, %s1051, %s1034, 128, 128, 8
        $region64: #{tpu_custom_call.1} parent=47 // pred_fallthru
          _
      $region48: #{tpu_custom_call.1} parent=5 // pred_fallthru
        _
      %p1060 = scmp.le.s32.totalorder 2, %s20
      // Predicated region
      $region65: #{tpu_custom_call.1} parent=5 // pred_check
        %p1061 = pneg %p1060
      $region66: #{tpu_custom_call.1} parent=5 // pred_check_branch
        %1063 = sbr.rel (%p1061) target = $region68
      $region67: #{tpu_custom_call.1} parent=5 // pred_region
        %s1064 = ssub.s32 %s20, 2
        // Predicated region
        $region69: #{tpu_custom_call.1} parent=67 // pred_check
          %p1065 = pneg %p201
        $region70: #{tpu_custom_call.1} parent=67 // pred_check_branch
          %1067 = sbr.rel (%p1065) target = $region72
        $region71: #{tpu_custom_call.1} parent=67 // pred_region
          %s1068 = sand.u32 %s186, 1
          %s1069 = scalar_lea.sflag [#allocation4], %s1068
          %s1070 = sand.u32 %s186, 1
          %s1071 = smul.addr %s1070, 104
          %s1072 = scalar_lea.vmem [#allocation8], %s1071
          %1073 = dma.done %s1069, 1664
        $region72: #{tpu_custom_call.1} parent=67 // pred_fallthru
          _
      $region68: #{tpu_custom_call.1} parent=5 // pred_fallthru
        _
    $region6: #{tpu_custom_call.1} parent=1 // loop_footer
      %s24 = sadd.s32 1, %s20
    $region7: #{tpu_custom_call.1} parent=1 // loop_footer_branch
      %19 = sbr.rel target = $region3
    $region8: #{tpu_custom_call.1} parent=1 // loop_exit
      _
    %1074 = vsyncpa [#allocation3], 1
    %s1075 = scalar_lea.sflag [#allocation3], 1
    %1076 = vsyncpa %s1075, 1
    %1077 = vsyncpa [#allocation6], 1
    %1078 = vsyncpa [#allocation4], 1
    %s1079 = scalar_lea.sflag [#allocation4], 1
    %1080 = vsyncpa %s1079, 1

// kernel: tpu_custom_call.1
$region0: #{tpu_custom_call.1}
  #allocation0 [shape = 'u32[]', space=smem, size = 0x4, offset = 0x4, fixed_abs, tag = 'smem constant byte address 0x4 - core index']
  #allocation1 [shape = 'u32[144,128]{1,0:T(1,128)}', space=vmem, size = 0x12000, scoped, tag = 'internal scratch']
  %s0 = inlined_call_operand.hbm [shape: f32[200,128], index: 0, kind: input, shape index: {}]
  %s1 = inlined_call_operand.hbm [shape: bf16[128,256], index: 1, kind: input, shape index: {}]
  %s2 = inlined_call_operand.vmem [shape: f32[1,256], index: 2, kind: input, shape index: {}]
  %s3 = inlined_call_operand.hbm [shape: bf16[256,128], index: 3, kind: input, shape index: {}]
  %s4 = inlined_call_operand.vmem [shape: f32[1,128], index: 4, kind: input, shape index: {}]
  %s5 = inlined_call_operand.vmem [shape: f32[1,128], index: 5, kind: input, shape index: {}]
  %s6 = inlined_call_operand.vmem [shape: f32[1,128], index: 6, kind: input, shape index: {}]
  %s7 = inlined_call_operand.hbm [shape: f32[200,128], index: 7, kind: output, shape index: {}]
  %s8 = sld [smem:[#allocation0]]
  $region73: #{tpu_custom_call.1} parent=0
    _
  %s10 = ssub.s32 1, %s8
  %s11 = scalar_select 0, %s10, %s8
  $region1: #{tpu_custom_call.1} parent=0
    #allocation2 [shape = 'u8[106496]{0}', space=vmem, size = 0x1a000, scoped, tag = 'input window, operand 0']
    #allocation3 [shape = 's32[2]{0}', space=sflag, size = 0x8, scoped, tag = 'scoped memory for tpu_custom_call.1']
    #allocation4 [shape = 's32[2]{0}', space=sflag, size = 0x8, scoped, tag = 'scoped memory for tpu_custom_call.1']
    #allocation5 [shape = 'u8[65536]{0}', space=vmem, size = 0x10000, scoped, tag = 'input window, operand 1, single buffered']
    #allocation6 [shape = 's32[1]{0}', space=sflag, size = 0x4, scoped, tag = 'scoped memory for tpu_custom_call.1']
    #allocation7 [shape = 'u8[65536]{0}', space=vmem, size = 0x10000, scoped, tag = 'input window, operand 3, single buffered']
    #allocation8 [shape = 'u8[106496]{0}', space=vmem, size = 0x1a000, scoped, tag = 'output window, operand 0']
    %12 = vsyncpa [#allocation3], 0
    %s13 = scalar_lea.sflag [#allocation3], 1
    %14 = vsyncpa %s13, 0
    %15 = vsyncpa [#allocation6], 0
    %16 = vsyncpa [#allocation4], 0
    %s17 = scalar_lea.sflag [#allocation4], 1
    %18 = vsyncpa %s17, 0
    loop: start=0, step=1, limit=4
    $region2: #{tpu_custom_call.1} parent=1 // loop_pre_header
      _
    $region3: #{tpu_custom_call.1} parent=1 // loop_header
      %s20 = sphi 0, %s24
      %p21 = scmp.ge.s32.totalorder %s20, 4
      %s30 = sphi 0, %s32
      %s33 = sphi 0, %s30
      %s34 = sphi 0, %s33
      %s50 = sphi 0, %s34
      %s54 = sphi 0, %s54
      %s56 = sphi 0, %s54
      %s57 = sphi 0, %s56
      %s71 = sphi 0, %s57
      %s75 = sphi 0, %s75
      %s77 = sphi 0, %s75
      %s78 = sphi 0, %s77
      %s92 = sphi 0, %s78
      %s96 = sphi 0, %s96
      %s98 = sphi 0, %s96
      %s99 = sphi 0, %s98
      %s113 = sphi 0, %s99
      %s117 = sphi 0, %s117
      %s119 = sphi 0, %s117
      %s120 = sphi 0, %s119
      %s134 = sphi 0, %s120
      %s138 = sphi 0, %s138
      %s140 = sphi 0, %s138
      %s141 = sphi 0, %s140
      %s155 = sphi 0, %s141
      %s159 = sphi 0, %s159
      %s161 = sphi 0, %s159
      %s162 = sphi 0, %s161
      %s176 = sphi 0, %s162
      %s182 = sphi 0, %s184
      %s185 = sphi 0, %s182
      %s186 = sphi 0, %s185
      %s202 = sphi 0, %s186
    $region4: #{tpu_custom_call.1} parent=1 // loop_header_branch
      %23 = sbr.rel (%p21) target = $region8
    $region5: #{tpu_custom_call.1} parent=1 // loop_body
      %s25 = ssub.s32 %s20, 1
      %s26 = ssub.s32 %s20, 2
      %s27 = sadd.s32 %s20, 1
      %s28 = ssub.s32 %s20, %s27
      %p29 = scmp.eq.s32.totalorder %s28, 0
      %s31 = sadd.s32 %s30, 1
      %s32 = scalar_select %p29, %s30, %s31
      %p35 = pneg %p29
      %p36 = scmp.eq.s32.totalorder %s20, 1
      %p37 = por %p35, %p36
      %p38 = scmp.ne.s32.totalorder %s30, %s33
      %p39 = scmp.eq.s32.totalorder %s20, 0
      %p40 = por %p38, %p39
      %p41 = scmp.ne.s32.totalorder %s30, %s33
      %p42 = scmp.eq.s32.totalorder %s25, 1
      %p43 = por %p41, %p42
      %p44 = scmp.ne.s32.totalorder %s33, %s34
      %p45 = scmp.eq.s32.totalorder %s25, 0
      %p46 = por %p44, %p45
      %p47 = scmp.ne.s32.totalorder %s33, %s34
      %p48 = scmp.eq.s32.totalorder %s26, 1
      %p49 = por %p47, %p48
      %p51 = scmp.ne.s32.totalorder %s34, %s50
      %p52 = scmp.eq.s32.totalorder %s26, 0
      %p53 = por %p51, %p52
      %s55 = sadd.s32 %s54, 1
      %p58 = scmp.eq.s32.totalorder %s20, 1
      %p59 = scmp.ne.s32.totalorder %s54, %s56
      %p60 = scmp.eq.s32.totalorder %s20, 0
      %p61 = por %p59, %p60
      %p62 = scmp.ne.s32.totalorder %s54, %s56
      %p63 = scmp.eq.s32.totalorder %s25, 1
      %p64 = por %p62, %p63
      %p65 = scmp.ne.s32.totalorder %s56, %s57
      %p66 = scmp.eq.s32.totalorder %s25, 0
      %p67 = por %p65, %p66
      %p68 = scmp.ne.s32.totalorder %s56, %s57
      %p69 = scmp.eq.s32.totalorder %s26, 1
      %p70 = por %p68, %p69
      %p72 = scmp.ne.s32.totalorder %s57, %s71
      %p73 = scmp.eq.s32.totalorder %s26, 0
      %p74 = por %p72, %p73
      %s76 = sadd.s32 %s75, 1
      %p79 = scmp.eq.s32.totalorder %s20, 1
      %p80 = scmp.ne.s32.totalorder %s75, %s77
      %p81 = scmp.eq.s32.totalorder %s20, 0
      %p82 = por %p80, %p81
      %p83 = scmp.ne.s32.totalorder %s75, %s77
      %p84 = scmp.eq.s32.totalorder %s25, 1
      %p85 = por %p83, %p84
      %p86 = scmp.ne.s32.totalorder %s77, %s78
      %p87 = scmp.eq.s32.totalorder %s25, 0
      %p88 = por %p86, %p87
      %p89 = scmp.ne.s32.totalorder %s77, %s78
      %p90 = scmp.eq.s32.totalorder %s26, 1
      %p91 = por %p89, %p90
      %p93 = scmp.ne.s32.totalorder %s78, %s92
      %p94 = scmp.eq.s32.totalorder %s26, 0
      %p95 = por %p93, %p94
      %s97 = sadd.s32 %s96, 1
      %p100 = scmp.eq.s32.totalorder %s20, 1
      %p101 = scmp.ne.s32.totalorder %s96, %s98
      %p102 = scmp.eq.s32.totalorder %s20, 0
      %p103 = por %p101, %p102
      %p104 = scmp.ne.s32.totalorder %s96, %s98
      %p105 = scmp.eq.s32.totalorder %s25, 1
      %p106 = por %p104, %p105
      %p107 = scmp.ne.s32.totalorder %s98, %s99
      %p108 = scmp.eq.s32.totalorder %s25, 0
      %p109 = por %p107, %p108
      %p110 = scmp.ne.s32.totalorder %s98, %s99
      %p111 = scmp.eq.s32.totalorder %s26, 1
      %p112 = por %p110, %p111
      %p114 = scmp.ne.s32.totalorder %s99, %s113
      %p115 = scmp.eq.s32.totalorder %s26, 0
      %p116 = por %p114, %p115
      %s118 = sadd.s32 %s117, 1
      %p121 = scmp.eq.s32.totalorder %s20, 1
      %p122 = scmp.ne.s32.totalorder %s117, %s119
      %p123 = scmp.eq.s32.totalorder %s20, 0
      %p124 = por %p122, %p123
      %p125 = scmp.ne.s32.totalorder %s117, %s119
      %p126 = scmp.eq.s32.totalorder %s25, 1
      %p127 = por %p125, %p126
      %p128 = scmp.ne.s32.totalorder %s119, %s120
      %p129 = scmp.eq.s32.totalorder %s25, 0
      %p130 = por %p128, %p129
      %p131 = scmp.ne.s32.totalorder %s119, %s120
      %p132 = scmp.eq.s32.totalorder %s26, 1
      %p133 = por %p131, %p132
      %p135 = scmp.ne.s32.totalorder %s120, %s134
      %p136 = scmp.eq.s32.totalorder %s26, 0
      %p137 = por %p135, %p136
      %s139 = sadd.s32 %s138, 1
      %p142 = scmp.eq.s32.totalorder %s20, 1
      %p143 = scmp.ne.s32.totalorder %s138, %s140
      %p144 = scmp.eq.s32.totalorder %s20, 0
      %p145 = por %p143, %p144
      %p146 = scmp.ne.s32.totalorder %s138, %s140
      %p147 = scmp.eq.s32.totalorder %s25, 1
      %p148 = por %p146, %p147
      %p149 = scmp.ne.s32.totalorder %s140, %s141
      %p150 = scmp.eq.s32.totalorder %s25, 0
      %p151 = por %p149, %p150
      %p152 = scmp.ne.s32.totalorder %s140, %s141
      %p153 = scmp.eq.s32.totalorder %s26, 1
      %p154 = por %p152, %p153
      %p156 = scmp.ne.s32.totalorder %s141, %s155
      %p157 = scmp.eq.s32.totalorder %s26, 0
      %p158 = por %p156, %p157
      %s160 = sadd.s32 %s159, 1
      %p163 = scmp.eq.s32.totalorder %s20, 1
      %p164 = scmp.ne.s32.totalorder %s159, %s161
      %p165 = scmp.eq.s32.totalorder %s20, 0
      %p166 = por %p164, %p165
      %p167 = scmp.ne.s32.totalorder %s159, %s161
      %p168 = scmp.eq.s32.totalorder %s25, 1
      %p169 = por %p167, %p168
      %p170 = scmp.ne.s32.totalorder %s161, %s162
      %p171 = scmp.eq.s32.totalorder %s25, 0
      %p172 = por %p170, %p171
      %p173 = scmp.ne.s32.totalorder %s161, %s162
      %p174 = scmp.eq.s32.totalorder %s26, 1
      %p175 = por %p173, %p174
      %p177 = scmp.ne.s32.totalorder %s162, %s176
      %p178 = scmp.eq.s32.totalorder %s26, 0
      %p179 = por %p177, %p178
      %s180 = ssub.s32 %s20, %s27
      %p181 = scmp.eq.s32.totalorder %s180, 0
      %s183 = sadd.s32 %s182, 1
      %s184 = scalar_select %p181, %s182, %s183
      %p187 = pneg %p181
      %p188 = scmp.eq.s32.totalorder %s20, 1
      %p189 = por %p187, %p188
      %p190 = scmp.ne.s32.totalorder %s182, %s185
      %p191 = scmp.eq.s32.totalorder %s20, 0
      %p192 = por %p190, %p191
      %p193 = scmp.ne.s32.totalorder %s182, %s185
      %p194 = scmp.eq.s32.totalorder %s25, 1
      %p195 = por %p193, %p194
      %p196 = scmp.ne.s32.totalorder %s185, %s186
      %p197 = scmp.eq.s32.totalorder %s25, 0
      %p198 = por %p196, %p197
      %p199 = scmp.ne.s32.totalorder %s185, %s186
      %p200 = scmp.eq.s32.totalorder %s26, 1
      %p201 = por %p199, %p200
      %p203 = scmp.ne.s32.totalorder %s186, %s202
      %p204 = scmp.eq.s32.totalorder %s26, 0
      %p205 = por %p203, %p204
      %p206 = scmp.le.s32.totalorder 1, %s20
      %p207 = scmp.lt.s32.totalorder %s20, 3
      %p208 = pnand %p206, %p207
      %p209 = pneg %p208
      // Predicated region
      $region9: #{tpu_custom_call.1} parent=5 // pred_check
        _
      $region10: #{tpu_custom_call.1} parent=5 // pred_check_branch
        %211 = sbr.rel (%p208) target = $region12
      $region11: #{tpu_custom_call.1} parent=5 // pred_region
        %s212 = ssub.s32 %s20, 1
        // Predicated region
        $region13: #{tpu_custom_call.1} parent=11 // pred_check
          %p213 = pneg %p67
        $region14: #{tpu_custom_call.1} parent=11 // pred_check_branch
          %215 = sbr.rel (%p213) target = $region16
        $region15: #{tpu_custom_call.1} parent=11 // pred_region
          %s217 = ssub.s32 2048, 2048
          %218 = vsyncadd [#allocation6], %s217
          %s219 = sshll.u32 [#allocation5], 4
          %s220 = int_to_ptr.vmem [resolvable:$true] %s219
          %225 = dma.hbm_to_vmem [thread:$0]  %s1, 2048, %s220, [#allocation6], 128, 128, 8
        $region16: #{tpu_custom_call.1} parent=11 // pred_fallthru
          _
        // Predicated region
        $region17: #{tpu_custom_call.1} parent=11 // pred_check
          %p226 = pneg %p88
        $region18: #{tpu_custom_call.1} parent=11 // pred_check_branch
          %228 = sbr.rel (%p226) target = $region20
        $region19: #{tpu_custom_call.1} parent=11 // pred_region
          _
        $region20: #{tpu_custom_call.1} parent=11 // pred_fallthru
          _
        // Predicated region
        $region21: #{tpu_custom_call.1} parent=11 // pred_check
          %p229 = pneg %p109
        $region22: #{tpu_custom_call.1} parent=11 // pred_check_branch
          %231 = sbr.rel (%p229) target = $region24
        $region23: #{tpu_custom_call.1} parent=11 // pred_region
          %s233 = ssub.s32 2048, 2048
          %234 = vsyncadd [#allocation6], %s233
          %s235 = sshll.u32 [#allocation7], 4
          %s236 = int_to_ptr.vmem [resolvable:$true] %s235
          %241 = dma.hbm_to_vmem [thread:$0]  %s3, 2048, %s236, [#allocation6], 64, 64, 4
        $region24: #{tpu_custom_call.1} parent=11 // pred_fallthru
          _
        // Predicated region
        $region25: #{tpu_custom_call.1} parent=11 // pred_check
          %p242 = pneg %p130
        $region26: #{tpu_custom_call.1} parent=11 // pred_check_branch
          %244 = sbr.rel (%p242) target = $region28
        $region27: #{tpu_custom_call.1} parent=11 // pred_region
          _
        $region28: #{tpu_custom_call.1} parent=11 // pred_fallthru
          _
        // Predicated region
        $region29: #{tpu_custom_call.1} parent=11 // pred_check
          %p245 = pneg %p151
        $region30: #{tpu_custom_call.1} parent=11 // pred_check_branch
          %247 = sbr.rel (%p245) target = $region32
        $region31: #{tpu_custom_call.1} parent=11 // pred_region
          _
        $region32: #{tpu_custom_call.1} parent=11 // pred_fallthru
          _
        // Predicated region
        $region33: #{tpu_custom_call.1} parent=11 // pred_check
          %p248 = pneg %p172
        $region34: #{tpu_custom_call.1} parent=11 // pred_check_branch
          %250 = sbr.rel (%p248) target = $region36
        $region35: #{tpu_custom_call.1} parent=11 // pred_region
          _
        $region36: #{tpu_custom_call.1} parent=11 // pred_fallthru
          _
      $region12: #{tpu_custom_call.1} parent=5 // pred_fallthru
        _
      %p251 = scmp.lt.s32.totalorder %s20, 2
      // Predicated region
      $region37: #{tpu_custom_call.1} parent=5 // pred_check
        %p252 = pneg %p251
      $region38: #{tpu_custom_call.1} parent=5 // pred_check_branch
        %254 = sbr.rel (%p252) target = $region40
      $region39: #{tpu_custom_call.1} parent=5 // pred_region
        // Predicated region
        $region41: #{tpu_custom_call.1} parent=39 // pred_check
          %p255 = pneg %p40
        $region42: #{tpu_custom_call.1} parent=39 // pred_check_branch
          %257 = sbr.rel (%p255) target = $region44
        $region43: #{tpu_custom_call.1} parent=39 // pred_region
          %s258 = sand.u32 %s30, 1
          %s259 = scalar_lea.sflag [#allocation3], %s258
          %s260 = sand.u32 %s30, 1
          %s261 = smul.addr %s260, 104
          %s262 = scalar_lea.vmem [#allocation2], %s261
          %s263 = smul.u32 13, %s20
          %s264 = ssub.s32 25, %s263
          %p265 = scmp.lt.s32.totalorder %s264, 13
          %s266 = scalar_select %p265, %s264, 13
          %s267 = smul.u32 128, %s266
          %s269 = ssub.s32 1664, %s267
          %270 = vsyncadd %s259, %s269
          %p271 = scmp.ne.s32.totalorder 0, %s267
          %s272 = smul.addr %s263, 128
          %s273 = scalar_lea.hbm %s0, %s272
          %s274 = smul.u32 8, %s266
          %s275 = sshll.u32 %s262, 4
          %s276 = int_to_ptr.vmem [resolvable:$true] %s275
          %s277 = sshll.u32 %s274, 4
          %281 = dma.hbm_to_vmem [thread:$0]  (%p271), %s273, %s277, %s276, %s259, 128, 128, 8
        $region44: #{tpu_custom_call.1} parent=39 // pred_fallthru
          _
      $region40: #{tpu_custom_call.1} parent=5 // pred_fallthru
        _
      %p282 = scmp.le.s32.totalorder 1, %s20
      %p283 = scmp.lt.s32.totalorder %s20, 3
      %p284 = pnand %p282, %p283
      %p285 = pneg %p284
      // Predicated region
      $region45: #{tpu_custom_call.1} parent=5 // pred_check
        _
      $region46: #{tpu_custom_call.1} parent=5 // pred_check_branch
        %287 = sbr.rel (%p284) target = $region48
      $region47: #{tpu_custom_call.1} parent=5 // pred_region
        %s288 = ssub.s32 %s20, 1
        %s289 = sand.u32 %s33, 1
        %s290 = scalar_lea.sflag [#allocation3], %s289
        %s291 = sand.u32 %s33, 1
        %s292 = smul.addr %s291, 104
        %s293 = scalar_lea.vmem [#allocation2], %s292
        // Predicated region
        $region49: #{tpu_custom_call.1} parent=47 // pred_check
          %p294 = pneg %p46
        $region50: #{tpu_custom_call.1} parent=47 // pred_check_branch
          %296 = sbr.rel (%p294) target = $region52
        $region51: #{tpu_custom_call.1} parent=47 // pred_region
          %297 = dma.done %s290, 1664
        $region52: #{tpu_custom_call.1} parent=47 // pred_fallthru
          _
        // Predicated region
        $region53: #{tpu_custom_call.1} parent=47 // pred_check
          %p298 = pneg %p67
        $region54: #{tpu_custom_call.1} parent=47 // pred_check_branch
          %300 = sbr.rel (%p298) target = $region56
        $region55: #{tpu_custom_call.1} parent=47 // pred_region
          %301 = dma.done [#allocation6], 2048
        $region56: #{tpu_custom_call.1} parent=47 // pred_fallthru
          _
        // Predicated region
        $region57: #{tpu_custom_call.1} parent=47 // pred_check
          %p302 = pneg %p109
        $region58: #{tpu_custom_call.1} parent=47 // pred_check_branch
          %304 = sbr.rel (%p302) target = $region60
        $region59: #{tpu_custom_call.1} parent=47 // pred_region
          %305 = dma.done [#allocation6], 2048
        $region60: #{tpu_custom_call.1} parent=47 // pred_fallthru
          _
        %s306 = sand.u32 %s33, 1
        %s307 = scalar_lea.sflag [#allocation3], %s306
        %s308 = sand.u32 %s33, 1
        %s309 = smul.addr %s308, 104
        %s310 = scalar_lea.vmem [#allocation2], %s309
        %p311 = pneg %p46
        %p312 = pneg %p43
        %p313 = pneg %p67
        %p314 = pneg %p64
        %p315 = pneg %p88
        %p316 = pneg %p85
        %p317 = pneg %p109
        %p318 = pneg %p106
        %p319 = pneg %p130
        %p320 = pneg %p127
        %p321 = pneg %p151
        %p322 = pneg %p148
        %p323 = pneg %p172
        %p324 = pneg %p169
        %p325 = pneg %p198
        %p326 = pneg %p195
        %s327 = sand.u32 %s185, 1
        %s328 = scalar_lea.sflag [#allocation4], %s327
        %s329 = sand.u32 %s185, 1
        %s330 = smul.addr %s329, 104
        %s331 = scalar_lea.vmem [#allocation8], %s330
        %s332 = smul.u32 13, %s25
        %s333 = ssub.s32 25, %s332
        %p334 = scmp.lt.s32.totalorder %s333, 13
        %s335 = scalar_select %p334, %s333, 13
        %s336 = smul.u32 128, %s335
        %s337 = smul.u32 13, %s25
        %s338 = ssub.s32 25, %s337
        %p339 = scmp.lt.s32.totalorder %s338, 13
        %s340 = scalar_select %p339, %s338, 13
        %s341 = smul.u32 128, %s340
        %v343 = vld [vmem:[%s293] sm:$0xff]
        %v344 = vld [vmem:[%s293 + $0x8] sm:$0xff]
        %v345 = vld [vmem:[%s293 + $0x10] sm:$0xff]
        %v346 = vld [vmem:[%s293 + $0x18] sm:$0xff]
        %v347 = vld [vmem:[%s293 + $0x20] sm:$0xff]
        %v348 = vld [vmem:[%s293 + $0x28] sm:$0xff]
        %v349 = vld [vmem:[%s293 + $0x30] sm:$0xff]
        %v350 = vld [vmem:[%s293 + $0x38] sm:$0xff]
        %v351 = vld [vmem:[%s293 + $0x40] sm:$0xff]
        %v352 = vld [vmem:[%s293 + $0x48] sm:$0xff]
        %v353 = vld [vmem:[%s293 + $0x50] sm:$0xff]
        %v354 = vld [vmem:[%s293 + $0x58] sm:$0xff]
        %v355 = vld [vmem:[%s293 + $0x60] sm:$0xff]
        %v356 = vpack.c.bf16 %v344, %v343
        %v357 = vpack.c.bf16 %v346, %v345
        %v358 = vpack.c.bf16 %v348, %v347
        %v359 = vpack.c.bf16 %v350, %v349
        %v360 = vpack.c.bf16 %v352, %v351
        %v361 = vpack.c.bf16 %v354, %v353
        %v362 = vpack.c.bf16 %v355, %v355
        %v363 = vld [vmem:[#allocation5] sm:$0xff]
        %v364 = vld [vmem:[#allocation5 + $0x8] sm:$0xff]
        %v365 = vld [vmem:[#allocation5 + $0x10] sm:$0xff]
        %v366 = vld [vmem:[#allocation5 + $0x18] sm:$0xff]
        %v367 = vld [vmem:[#allocation5 + $0x20] sm:$0xff]
        %v368 = vld [vmem:[#allocation5 + $0x28] sm:$0xff]
        %v369 = vld [vmem:[#allocation5 + $0x30] sm:$0xff]
        %v370 = vld [vmem:[#allocation5 + $0x38] sm:$0xff]
        %v371 = vld [vmem:[#allocation5 + $0x40] sm:$0xff]
        %v372 = vld [vmem:[#allocation5 + $0x48] sm:$0xff]
        %v373 = vld [vmem:[#allocation5 + $0x50] sm:$0xff]
        %v374 = vld [vmem:[#allocation5 + $0x58] sm:$0xff]
        %v375 = vld [vmem:[#allocation5 + $0x60] sm:$0xff]
        %v376 = vld [vmem:[#allocation5 + $0x68] sm:$0xff]
        %v377 = vld [vmem:[#allocation5 + $0x70] sm:$0xff]
        %v378 = vld [vmem:[#allocation5 + $0x78] sm:$0xff]
        %v379 = vld [vmem:[%s2] sm:$0x3]
        %v381 = vlaneseq
        %v382 = vshrl.u32 %v381, 7
        %v383 = vsub.s32 0, %v382
        %v384 = vrot.slane %v379, %v383
        %v385 = vlaneseq
        %v386 = vshrl.u32 %v385, 7
        %v387 = vsub.s32 1, %v386
        %v388 = vrot.slane %v379, %v387
        %v407 = vunpack.c.l.b16 %v363
        %v408 = vunpack.c.h.b16 %v363
        %v409 = vunpack.c.l.b16 %v364
        %v410 = vunpack.c.h.b16 %v364
        %v411 = vunpack.c.l.b16 %v365
        %v412 = vunpack.c.h.b16 %v365
        %v413 = vunpack.c.l.b16 %v366
        %v414 = vunpack.c.h.b16 %v366
        %v415 = vunpack.c.l.b16 %v367
        %v416 = vunpack.c.h.b16 %v367
        %v417 = vunpack.c.l.b16 %v368
        %v418 = vunpack.c.h.b16 %v368
        %v419 = vunpack.c.l.b16 %v369
        %v420 = vunpack.c.h.b16 %v369
        %v421 = vunpack.c.l.b16 %v370
        %v422 = vunpack.c.h.b16 %v370
        %v423 = vunpack.c.l.b16 %v371
        %v424 = vunpack.c.h.b16 %v371
        %v425 = vunpack.c.l.b16 %v372
        %v426 = vunpack.c.h.b16 %v372
        %v427 = vunpack.c.l.b16 %v373
        %v428 = vunpack.c.h.b16 %v373
        %v429 = vunpack.c.l.b16 %v374
        %v430 = vunpack.c.h.b16 %v374
        %v431 = vunpack.c.l.b16 %v375
        %v432 = vunpack.c.h.b16 %v375
        %v433 = vunpack.c.l.b16 %v376
        %v434 = vunpack.c.h.b16 %v376
        %v435 = vunpack.c.l.b16 %v377
        %v436 = vunpack.c.h.b16 %v377
        %v437 = vunpack.c.l.b16 %v378
        %v438 = vunpack.c.h.b16 %v378
        %v439 = vpack.c.b16 %v409, %v407
        %v440 = vpack.c.b16 %v410, %v408
        %v441 = vpack.c.b16 %v413, %v411
        %v442 = vpack.c.b16 %v414, %v412
        %v443 = vpack.c.b16 %v417, %v415
        %v444 = vpack.c.b16 %v418, %v416
        %v445 = vpack.c.b16 %v421, %v419
        %v446 = vpack.c.b16 %v422, %v420
        %v447 = vpack.c.b16 %v425, %v423
        %v448 = vpack.c.b16 %v426, %v424
        %v449 = vpack.c.b16 %v429, %v427
        %v450 = vpack.c.b16 %v430, %v428
        %v451 = vpack.c.b16 %v433, %v431
        %v452 = vpack.c.b16 %v434, %v432
        %v453 = vpack.c.b16 %v437, %v435
        %v454 = vpack.c.b16 %v438, %v436
        %471 = vmatprep.subr.bf16.mxu0 %v440
        %472 = vmatpush1.bf16.msra.mxu0 %v439
        %473 = vmatprep.subr.bf16.mxu0 %v442
        %474 = vmatpush1.bf16.msra.mxu0 %v441
        %475 = vmatprep.subr.bf16.mxu0 %v444
        %476 = vmatpush1.bf16.msra.mxu0 %v443
        %477 = vmatprep.subr.bf16.mxu0 %v446
        %478 = vmatpush1.bf16.msra.mxu0 %v445
        %479 = vmatprep.subr.bf16.mxu0 %v448
        %480 = vmatpush1.bf16.msra.mxu0 %v447
        %481 = vmatprep.subr.bf16.mxu0 %v450
        %482 = vmatpush1.bf16.msra.mxu0 %v449
        %483 = vmatprep.subr.bf16.mxu0 %v452
        %484 = vmatpush1.bf16.msra.mxu0 %v451
        %485 = vmatprep.subr.bf16.mxu0 %v454
        %486 = vmatpush1.bf16.msra.mxu0 %v453
        %487 = vmatprep.subr.bf16.mxu0 0
        %488 = vmatpush1.bf16.msra.mxu0 0
        %489 = vmatprep.subr.bf16.mxu0 0
        %490 = vmatpush1.bf16.msra.mxu0 0
        %491 = vmatprep.subr.bf16.mxu0 0
        %492 = vmatpush1.bf16.msra.mxu0 0
        %493 = vmatprep.subr.bf16.mxu0 0
        %494 = vmatpush1.bf16.msra.mxu0 0
        %495 = vmatprep.subr.bf16.mxu0 0
        %496 = vmatpush1.bf16.msra.mxu0 0
        %497 = vmatprep.subr.bf16.mxu0 0
        %498 = vmatpush1.bf16.msra.mxu0 0
        %499 = vmatprep.subr.bf16.mxu0 0
        %500 = vmatpush1.bf16.msra.mxu0 0
        %501 = vmatprep.subr.bf16.mxu0 0
        %502 = vmatpush1.bf16.msra.mxu0 0
        %503 = vmatprep.mubr.bf16.mxu0 0
        %504 = vmatmul.mubr.bf16.gmra.mrb[0].mxu0 %v356
        %v505 = vpop.f32.mrb[0].mxu0
        %v506 = vadd.f32 %v384, %v505
        %v507 = vpop.f32.mrb[0].mxu0
        %v508 = vadd.f32 %v388, %v507
        %v509 = vpop.f32.mrb[0].mxu0
        %v510 = vadd.f32 %v384, %v509
        %v511 = vpop.f32.mrb[0].mxu0
        %v512 = vadd.f32 %v388, %v511
        %513 = vmatprep.mubr.bf16.mxu0 0
        %514 = vmatmul.mubr.bf16.gmra.mrb[0].mxu0 %v357
        %v515 = vpop.f32.mrb[0].mxu0
        %v516 = vadd.f32 %v384, %v515
        %v517 = vpop.f32.mrb[0].mxu0
        %v518 = vadd.f32 %v388, %v517
        %v519 = vpop.f32.mrb[0].mxu0
        %v520 = vadd.f32 %v384, %v519
        %v521 = vpop.f32.mrb[0].mxu0
        %v522 = vadd.f32 %v388, %v521
        %523 = vmatprep.mubr.bf16.mxu0 0
        %524 = vmatmul.mubr.bf16.gmra.mrb[0].mxu0 %v358
        %v525 = vpop.f32.mrb[0].mxu0
        %v526 = vadd.f32 %v384, %v525
        %v527 = vpop.f32.mrb[0].mxu0
        %v528 = vadd.f32 %v388, %v527
        %v529 = vpop.f32.mrb[0].mxu0
        %v530 = vadd.f32 %v384, %v529
        %v531 = vpop.f32.mrb[0].mxu0
        %v532 = vadd.f32 %v388, %v531
        %533 = vmatprep.mubr.bf16.mxu0 0
        %534 = vmatmul.mubr.bf16.gmra.mrb[0].mxu0 %v359
        %v535 = vpop.f32.mrb[0].mxu0
        %v536 = vadd.f32 %v384, %v535
        %v537 = vpop.f32.mrb[0].mxu0
        %v538 = vadd.f32 %v388, %v537
        %v539 = vpop.f32.mrb[0].mxu0
        %v540 = vadd.f32 %v384, %v539
        %v541 = vpop.f32.mrb[0].mxu0
        %v542 = vadd.f32 %v388, %v541
        %543 = vmatprep.mubr.bf16.mxu0 0
        %544 = vmatmul.mubr.bf16.gmra.mrb[0].mxu0 %v360
        %v545 = vpop.f32.mrb[0].mxu0
        %v546 = vadd.f32 %v384, %v545
        %v547 = vpop.f32.mrb[0].mxu0
        %v548 = vadd.f32 %v388, %v547
        %v549 = vpop.f32.mrb[0].mxu0
        %v550 = vadd.f32 %v384, %v549
        %v551 = vpop.f32.mrb[0].mxu0
        %v552 = vadd.f32 %v388, %v551
        %553 = vmatprep.mubr.bf16.mxu0 0
        %554 = vmatmul.mubr.bf16.gmra.mrb[0].mxu0 %v361
        %v555 = vpop.f32.mrb[0].mxu0
        %v556 = vadd.f32 %v384, %v555
        %v557 = vpop.f32.mrb[0].mxu0
        %v558 = vadd.f32 %v388, %v557
        %v559 = vpop.f32.mrb[0].mxu0
        %v560 = vadd.f32 %v384, %v559
        %v561 = vpop.f32.mrb[0].mxu0
        %v562 = vadd.f32 %v388, %v561
        %563 = vmatprep.mubr.bf16.mxu0 0
        %564 = vmatmul.mubr.bf16.gmra.mrb[0].mxu0 %v362
        %v565 = vpop.f32.mrb[0].mxu0
        %v566 = vadd.f32 %v384, %v565
        %v567 = vpop.f32.mrb[0].mxu0
        %v568 = vadd.f32 %v388, %v567
        %v569 = vpop.f32.mrb[0].mxu0
        %v570 = vpop.f32.mrb[0].mxu0
        %571 = vdwg.mxu0
        %v572 = vpack.c.bf16 %v510, %v506
        %v573 = vpack.c.bf16 %v512, %v508
        %v574 = vpack.c.bf16 %v520, %v516
        %v575 = vpack.c.bf16 %v522, %v518
        %v576 = vpack.c.bf16 %v530, %v526
        %v577 = vpack.c.bf16 %v532, %v528
        %v578 = vpack.c.bf16 %v540, %v536
        %v579 = vpack.c.bf16 %v542, %v538
        %v580 = vpack.c.bf16 %v550, %v546
        %v581 = vpack.c.bf16 %v552, %v548
        %v582 = vpack.c.bf16 %v560, %v556
        %v583 = vpack.c.bf16 %v562, %v558
        %v584 = vpack.c.bf16 %v566, %v566
        %v585 = vpack.c.bf16 %v568, %v568
        %v586 = vmax.bf16 %v572, 0
        %v587 = vmax.bf16 %v573, 0
        %v588 = vmax.bf16 %v574, 0
        %v589 = vmax.bf16 %v575, 0
        %v590 = vmax.bf16 %v576, 0
        %v591 = vmax.bf16 %v577, 0
        %v592 = vmax.bf16 %v578, 0
        %v593 = vmax.bf16 %v579, 0
        %v594 = vmax.bf16 %v580, 0
        %v595 = vmax.bf16 %v581, 0
        %v596 = vmax.bf16 %v582, 0
        %v597 = vmax.bf16 %v583, 0
        %v598 = vmax.bf16 %v584, 0
        %v599 = vmax.bf16 %v585, 0
        %v600 = vld [vmem:[#allocation7] sm:$0xf]
        %v601 = vld [vmem:[#allocation7 + $0x4] sm:$0xf]
        %v602 = vld [vmem:[#allocation7 + $0x8] sm:$0xf]
        %v603 = vld [vmem:[#allocation7 + $0xc] sm:$0xf]
        %v604 = vld [vmem:[#allocation7 + $0x10] sm:$0xf]
        %v605 = vld [vmem:[#allocation7 + $0x14] sm:$0xf]
        %v606 = vld [vmem:[#allocation7 + $0x18] sm:$0xf]
        %v607 = vld [vmem:[#allocation7 + $0x1c] sm:$0xf]
        %v608 = vld [vmem:[#allocation7 + $0x20] sm:$0xf]
        %v609 = vld [vmem:[#allocation7 + $0x24] sm:$0xf]
        %v610 = vld [vmem:[#allocation7 + $0x28] sm:$0xf]
        %v611 = vld [vmem:[#allocation7 + $0x2c] sm:$0xf]
        %v612 = vld [vmem:[#allocation7 + $0x30] sm:$0xf]
        %v613 = vld [vmem:[#allocation7 + $0x34] sm:$0xf]
        %v614 = vld [vmem:[#allocation7 + $0x38] sm:$0xf]
        %v615 = vld [vmem:[#allocation7 + $0x3c] sm:$0xf]
        %v616 = vld [vmem:[#allocation7 + $0x40] sm:$0xf]
        %v617 = vld [vmem:[#allocation7 + $0x44] sm:$0xf]
        %v618 = vld [vmem:[#allocation7 + $0x48] sm:$0xf]
        %v619 = vld [vmem:[#allocation7 + $0x4c] sm:$0xf]
        %v620 = vld [vmem:[#allocation7 + $0x50] sm:$0xf]
        %v621 = vld [vmem:[#allocation7 + $0x54] sm:$0xf]
        %v622 = vld [vmem:[#allocation7 + $0x58] sm:$0xf]
        %v623 = vld [vmem:[#allocation7 + $0x5c] sm:$0xf]
        %v624 = vld [vmem:[#allocation7 + $0x60] sm:$0xf]
        %v625 = vld [vmem:[#allocation7 + $0x64] sm:$0xf]
        %v626 = vld [vmem:[#allocation7 + $0x68] sm:$0xf]
        %v627 = vld [vmem:[#allocation7 + $0x6c] sm:$0xf]
        %v628 = vld [vmem:[#allocation7 + $0x70] sm:$0xf]
        %v629 = vld [vmem:[#allocation7 + $0x74] sm:$0xf]
        %v630 = vld [vmem:[#allocation7 + $0x78] sm:$0xf]
        %v631 = vld [vmem:[#allocation7 + $0x7c] sm:$0xf]
        %v632 = vld [vmem:[%s4] sm:$0x1]
        %v634 = vlaneseq
        %v635 = vshrl.u32 %v634, 7
        %v636 = vsub.s32 0, %v635
        %v637 = vrot.slane %v632, %v636
        %v671 = vunpack.c.l.b16 %v600
        %v672 = vunpack.c.l.b16 %v601
        %v673 = vunpack.c.l.b16 %v602
        %v674 = vunpack.c.l.b16 %v603
        %v675 = vunpack.c.l.b16 %v604
        %v676 = vunpack.c.l.b16 %v605
        %v677 = vunpack.c.l.b16 %v606
        %v678 = vunpack.c.l.b16 %v607
        %v679 = vunpack.c.l.b16 %v608
        %v680 = vunpack.c.l.b16 %v609
        %v681 = vunpack.c.l.b16 %v610
        %v682 = vunpack.c.l.b16 %v611
        %v683 = vunpack.c.l.b16 %v612
        %v684 = vunpack.c.l.b16 %v613
        %v685 = vunpack.c.l.b16 %v614
        %v686 = vunpack.c.l.b16 %v615
        %v687 = vunpack.c.l.b16 %v616
        %v688 = vunpack.c.l.b16 %v617
        %v689 = vunpack.c.l.b16 %v618
        %v690 = vunpack.c.l.b16 %v619
        %v691 = vunpack.c.l.b16 %v620
        %v692 = vunpack.c.l.b16 %v621
        %v693 = vunpack.c.l.b16 %v622
        %v694 = vunpack.c.l.b16 %v623
        %v695 = vunpack.c.l.b16 %v624
        %v696 = vunpack.c.l.b16 %v625
        %v697 = vunpack.c.l.b16 %v626
        %v698 = vunpack.c.l.b16 %v627
        %v699 = vunpack.c.l.b16 %v628
        %v700 = vunpack.c.l.b16 %v629
        %v701 = vunpack.c.l.b16 %v630
        %v702 = vunpack.c.l.b16 %v631
        %v703 = vpack.c.b16 %v672, %v671
        %v704 = vpack.c.b16 %v674, %v673
        %v705 = vpack.c.b16 %v676, %v675
        %v706 = vpack.c.b16 %v678, %v677
        %v707 = vpack.c.b16 %v680, %v679
        %v708 = vpack.c.b16 %v682, %v681
        %v709 = vpack.c.b16 %v684, %v683
        %v710 = vpack.c.b16 %v686, %v685
        %v711 = vpack.c.b16 %v688, %v687
        %v712 = vpack.c.b16 %v690, %v689
        %v713 = vpack.c.b16 %v692, %v691
        %v714 = vpack.c.b16 %v694, %v693
        %v715 = vpack.c.b16 %v696, %v695
        %v716 = vpack.c.b16 %v698, %v697
        %v717 = vpack.c.b16 %v700, %v699
        %v718 = vpack.c.b16 %v702, %v701
        %735 = vmatprep.subr.bf16.mxu0 0
        %736 = vmatpush1.bf16.msra.mxu0 %v703
        %737 = vmatprep.subr.bf16.mxu0 0
        %738 = vmatpush1.bf16.msra.mxu0 %v704
        %739 = vmatprep.subr.bf16.mxu0 0
        %740 = vmatpush1.bf16.msra.mxu0 %v705
        %741 = vmatprep.subr.bf16.mxu0 0
        %742 = vmatpush1.bf16.msra.mxu0 %v706
        %743 = vmatprep.subr.bf16.mxu0 0
        %744 = vmatpush1.bf16.msra.mxu0 %v707
        %745 = vmatprep.subr.bf16.mxu0 0
        %746 = vmatpush1.bf16.msra.mxu0 %v708
        %747 = vmatprep.subr.bf16.mxu0 0
        %748 = vmatpush1.bf16.msra.mxu0 %v709
        %749 = vmatprep.subr.bf16.mxu0 0
        %750 = vmatpush1.bf16.msra.mxu0 %v710
        %751 = vmatprep.subr.bf16.mxu0 0
        %752 = vmatpush1.bf16.msra.mxu0 %v711
        %753 = vmatprep.subr.bf16.mxu0 0
        %754 = vmatpush1.bf16.msra.mxu0 %v712
        %755 = vmatprep.subr.bf16.mxu0 0
        %756 = vmatpush1.bf16.msra.mxu0 %v713
        %757 = vmatprep.subr.bf16.mxu0 0
        %758 = vmatpush1.bf16.msra.mxu0 %v714
        %759 = vmatprep.subr.bf16.mxu0 0
        %760 = vmatpush1.bf16.msra.mxu0 %v715
        %761 = vmatprep.subr.bf16.mxu0 0
        %762 = vmatpush1.bf16.msra.mxu0 %v716
        %763 = vmatprep.subr.bf16.mxu0 0
        %764 = vmatpush1.bf16.msra.mxu0 %v717
        %765 = vmatprep.subr.bf16.mxu0 0
        %766 = vmatpush1.bf16.msra.mxu0 %v718
        %767 = vmatprep.mubr.bf16.mxu0 %v587
        %768 = vmatmul.mubr.bf16.gmra.mrb[0].mxu0 %v586
        %v769 = vpop.f32.mrb[0].mxu0
        %v770 = vadd.f32 %v637, %v769
        %v771 = vpop.f32.mrb[0].mxu0
        %v772 = vpop.f32.mrb[0].mxu0
        %v773 = vadd.f32 %v637, %v772
        %v774 = vpop.f32.mrb[0].mxu0
        %775 = vmatprep.mubr.bf16.mxu0 %v589
        %776 = vmatmul.mubr.bf16.gmra.mrb[0].mxu0 %v588
        %v777 = vpop.f32.mrb[0].mxu0
        %v778 = vadd.f32 %v637, %v777
        %v779 = vpop.f32.mrb[0].mxu0
        %v780 = vpop.f32.mrb[0].mxu0
        %v781 = vadd.f32 %v637, %v780
        %v782 = vpop.f32.mrb[0].mxu0
        %783 = vmatprep.mubr.bf16.mxu0 %v591
        %784 = vmatmul.mubr.bf16.gmra.mrb[0].mxu0 %v590
        %v785 = vpop.f32.mrb[0].mxu0
        %v786 = vadd.f32 %v637, %v785
        %v787 = vpop.f32.mrb[0].mxu0
        %v788 = vpop.f32.mrb[0].mxu0
        %v789 = vadd.f32 %v637, %v788
        %v790 = vpop.f32.mrb[0].mxu0
        %791 = vmatprep.mubr.bf16.mxu0 %v593
        %792 = vmatmul.mubr.bf16.gmra.mrb[0].mxu0 %v592
        %v793 = vpop.f32.mrb[0].mxu0
        %v794 = vadd.f32 %v637, %v793
        %v795 = vpop.f32.mrb[0].mxu0
        %v796 = vpop.f32.mrb[0].mxu0
        %v797 = vadd.f32 %v637, %v796
        %v798 = vpop.f32.mrb[0].mxu0
        %799 = vmatprep.mubr.bf16.mxu0 %v595
        %800 = vmatmul.mubr.bf16.gmra.mrb[0].mxu0 %v594
        %v801 = vpop.f32.mrb[0].mxu0
        %v802 = vadd.f32 %v637, %v801
        %v803 = vpop.f32.mrb[0].mxu0
        %v804 = vpop.f32.mrb[0].mxu0
        %v805 = vadd.f32 %v637, %v804
        %v806 = vpop.f32.mrb[0].mxu0
        %807 = vmatprep.mubr.bf16.mxu0 %v597
        %808 = vmatmul.mubr.bf16.gmra.mrb[0].mxu0 %v596
        %v809 = vpop.f32.mrb[0].mxu0
        %v810 = vadd.f32 %v637, %v809
        %v811 = vpop.f32.mrb[0].mxu0
        %v812 = vpop.f32.mrb[0].mxu0
        %v813 = vadd.f32 %v637, %v812
        %v814 = vpop.f32.mrb[0].mxu0
        %815 = vmatprep.mubr.bf16.mxu0 %v599
        %816 = vmatmul.mubr.bf16.gmra.mrb[0].mxu0 %v598
        %v817 = vpop.f32.mrb[0].mxu0
        %v818 = vadd.f32 %v637, %v817
        %v819 = vpop.f32.mrb[0].mxu0
        %v820 = vpop.f32.mrb[0].mxu0
        %v821 = vpop.f32.mrb[0].mxu0
        %822 = vdwg.mxu0
        %v823 = vadd.f32 %v343, %v770
        %v824 = vadd.f32 %v344, %v773
        %v825 = vadd.f32 %v345, %v778
        %v826 = vadd.f32 %v346, %v781
        %v827 = vadd.f32 %v347, %v786
        %v828 = vadd.f32 %v348, %v789
        %v829 = vadd.f32 %v349, %v794
        %v830 = vadd.f32 %v350, %v797
        %v831 = vadd.f32 %v351, %v802
        %v832 = vadd.f32 %v352, %v805
        %v833 = vadd.f32 %v353, %v810
        %v834 = vadd.f32 %v354, %v813
        %v835 = vadd.f32 %v355, %v818
        %836 = vadd.xlane.f32.xlu0 %v823
        %v837 = vpop.xlane.xlu0 %836
        %838 = vadd.xlane.f32.xlu0 %v824
        %v839 = vpop.xlane.xlu0 %838
        %840 = vadd.xlane.f32.xlu0 %v825
        %v841 = vpop.xlane.xlu0 %840
        %842 = vadd.xlane.f32.xlu0 %v826
        %v843 = vpop.xlane.xlu0 %842
        %844 = vadd.xlane.f32.xlu0 %v827
        %v845 = vpop.xlane.xlu0 %844
        %846 = vadd.xlane.f32.xlu0 %v828
        %v847 = vpop.xlane.xlu0 %846
        %848 = vadd.xlane.f32.xlu0 %v829
        %v849 = vpop.xlane.xlu0 %848
        %850 = vadd.xlane.f32.xlu0 %v830
        %v851 = vpop.xlane.xlu0 %850
        %852 = vadd.xlane.f32.xlu0 %v831
        %v853 = vpop.xlane.xlu0 %852
        %854 = vadd.xlane.f32.xlu0 %v832
        %v855 = vpop.xlane.xlu0 %854
        %856 = vadd.xlane.f32.xlu0 %v833
        %v857 = vpop.xlane.xlu0 %856
        %858 = vadd.xlane.f32.xlu0 %v834
        %v859 = vpop.xlane.xlu0 %858
        %860 = vadd.xlane.f32.xlu0 %v835
        %v861 = vpop.xlane.xlu0 %860
        %v862 = vrcp.pop 128.0
        %v863 = vmul.f32 %v837, %v862
        %v864 = vmul.f32 %v839, %v862
        %v865 = vmul.f32 %v841, %v862
        %v866 = vmul.f32 %v843, %v862
        %v867 = vmul.f32 %v845, %v862
        %v868 = vmul.f32 %v847, %v862
        %v869 = vmul.f32 %v849, %v862
        %v870 = vmul.f32 %v851, %v862
        %v871 = vmul.f32 %v853, %v862
        %v872 = vmul.f32 %v855, %v862
        %v873 = vmul.f32 %v857, %v862
        %v874 = vmul.f32 %v859, %v862
        %v875 = vmul.f32 %v861, %v862
        %v876 = vsub.f32 %v823, %v863
        %v877 = vsub.f32 %v824, %v864
        %v878 = vsub.f32 %v825, %v865
        %v879 = vsub.f32 %v826, %v866
        %v880 = vsub.f32 %v827, %v867
        %v881 = vsub.f32 %v828, %v868
        %v882 = vsub.f32 %v829, %v869
        %v883 = vsub.f32 %v830, %v870
        %v884 = vsub.f32 %v831, %v871
        %v885 = vsub.f32 %v832, %v872
        %v886 = vsub.f32 %v833, %v873
        %v887 = vsub.f32 %v834, %v874
        %v888 = vsub.f32 %v835, %v875
        %v889 = vmul.f32 %v876, %v876
        %v890 = vmul.f32 %v877, %v877
        %v891 = vmul.f32 %v878, %v878
        %v892 = vmul.f32 %v879, %v879
        %v893 = vmul.f32 %v880, %v880
        %v894 = vmul.f32 %v881, %v881
        %v895 = vmul.f32 %v882, %v882
        %v896 = vmul.f32 %v883, %v883
        %v897 = vmul.f32 %v884, %v884
        %v898 = vmul.f32 %v885, %v885
        %v899 = vmul.f32 %v886, %v886
        %v900 = vmul.f32 %v887, %v887
        %v901 = vmul.f32 %v888, %v888
        %902 = vadd.xlane.f32.xlu0 %v889
        %v903 = vpop.xlane.xlu0 %902
        %904 = vadd.xlane.f32.xlu0 %v890
        %v905 = vpop.xlane.xlu0 %904
        %906 = vadd.xlane.f32.xlu0 %v891
        %v907 = vpop.xlane.xlu0 %906
        %908 = vadd.xlane.f32.xlu0 %v892
        %v909 = vpop.xlane.xlu0 %908
        %910 = vadd.xlane.f32.xlu0 %v893
        %v911 = vpop.xlane.xlu0 %910
        %912 = vadd.xlane.f32.xlu0 %v894
        %v913 = vpop.xlane.xlu0 %912
        %914 = vadd.xlane.f32.xlu0 %v895
        %v915 = vpop.xlane.xlu0 %914
        %916 = vadd.xlane.f32.xlu0 %v896
        %v917 = vpop.xlane.xlu0 %916
        %918 = vadd.xlane.f32.xlu0 %v897
        %v919 = vpop.xlane.xlu0 %918
        %920 = vadd.xlane.f32.xlu0 %v898
        %v921 = vpop.xlane.xlu0 %920
        %922 = vadd.xlane.f32.xlu0 %v899
        %v923 = vpop.xlane.xlu0 %922
        %924 = vadd.xlane.f32.xlu0 %v900
        %v925 = vpop.xlane.xlu0 %924
        %926 = vadd.xlane.f32.xlu0 %v901
        %v927 = vpop.xlane.xlu0 %926
        %v928 = vmul.f32 %v903, %v862
        %v929 = vmul.f32 %v905, %v862
        %v930 = vmul.f32 %v907, %v862
        %v931 = vmul.f32 %v909, %v862
        %v932 = vmul.f32 %v911, %v862
        %v933 = vmul.f32 %v913, %v862
        %v934 = vmul.f32 %v915, %v862
        %v935 = vmul.f32 %v917, %v862
        %v936 = vmul.f32 %v919, %v862
        %v937 = vmul.f32 %v921, %v862
        %v938 = vmul.f32 %v923, %v862
        %v939 = vmul.f32 %v925, %v862
        %v940 = vmul.f32 %v927, %v862
        %v941 = vadd.f32 %v928, 1e-05
        %v942 = vadd.f32 %v929, 1e-05
        %v943 = vadd.f32 %v930, 1e-05
        %v944 = vadd.f32 %v931, 1e-05
        %v945 = vadd.f32 %v932, 1e-05
        %v946 = vadd.f32 %v933, 1e-05
        %v947 = vadd.f32 %v934, 1e-05
        %v948 = vadd.f32 %v935, 1e-05
        %v949 = vadd.f32 %v936, 1e-05
        %v950 = vadd.f32 %v937, 1e-05
        %v951 = vadd.f32 %v938, 1e-05
        %v952 = vadd.f32 %v939, 1e-05
        %v953 = vadd.f32 %v940, 1e-05
        %v954 = vrsqrt.pop %v941
        %v955 = vrsqrt.pop %v942
        %v956 = vrsqrt.pop %v943
        %v957 = vrsqrt.pop %v944
        %v958 = vrsqrt.pop %v945
        %v959 = vrsqrt.pop %v946
        %v960 = vrsqrt.pop %v947
        %v961 = vrsqrt.pop %v948
        %v962 = vrsqrt.pop %v949
        %v963 = vrsqrt.pop %v950
        %v964 = vrsqrt.pop %v951
        %v965 = vrsqrt.pop %v952
        %v966 = vrsqrt.pop %v953
        %v967 = vmul.f32 %v876, %v954
        %v968 = vmul.f32 %v877, %v955
        %v969 = vmul.f32 %v878, %v956
        %v970 = vmul.f32 %v879, %v957
        %v971 = vmul.f32 %v880, %v958
        %v972 = vmul.f32 %v881, %v959
        %v973 = vmul.f32 %v882, %v960
        %v974 = vmul.f32 %v883, %v961
        %v975 = vmul.f32 %v884, %v962
        %v976 = vmul.f32 %v885, %v963
        %v977 = vmul.f32 %v886, %v964
        %v978 = vmul.f32 %v887, %v965
        %v979 = vmul.f32 %v888, %v966
        %v980 = vld [vmem:[%s5] sm:$0x1]
        %v982 = vlaneseq
        %v983 = vshrl.u32 %v982, 7
        %v984 = vsub.s32 0, %v983
        %v985 = vrot.slane %v980, %v984
        %v987 = vmul.f32 %v967, %v985
        %v988 = vmul.f32 %v968, %v985
        %v989 = vmul.f32 %v969, %v985
        %v990 = vmul.f32 %v970, %v985
        %v991 = vmul.f32 %v971, %v985
        %v992 = vmul.f32 %v972, %v985
        %v993 = vmul.f32 %v973, %v985
        %v994 = vmul.f32 %v974, %v985
        %v995 = vmul.f32 %v975, %v985
        %v996 = vmul.f32 %v976, %v985
        %v997 = vmul.f32 %v977, %v985
        %v998 = vmul.f32 %v978, %v985
        %v999 = vmul.f32 %v979, %v985
        %v1000 = vld [vmem:[%s6] sm:$0x1]
        %v1002 = vlaneseq
        %v1003 = vshrl.u32 %v1002, 7
        %v1004 = vsub.s32 0, %v1003
        %v1005 = vrot.slane %v1000, %v1004
        %v1007 = vadd.f32 %v987, %v1005
        %v1008 = vadd.f32 %v988, %v1005
        %v1009 = vadd.f32 %v989, %v1005
        %v1010 = vadd.f32 %v990, %v1005
        %v1011 = vadd.f32 %v991, %v1005
        %v1012 = vadd.f32 %v992, %v1005
        %v1013 = vadd.f32 %v993, %v1005
        %v1014 = vadd.f32 %v994, %v1005
        %v1015 = vadd.f32 %v995, %v1005
        %v1016 = vadd.f32 %v996, %v1005
        %v1017 = vadd.f32 %v997, %v1005
        %v1018 = vadd.f32 %v998, %v1005
        %v1019 = vadd.f32 %v999, %v1005
        %1020 = vst [vmem:[%s331] sm:$0xff] %v1007
        %1021 = vst [vmem:[%s331 + $0x8] sm:$0xff] %v1008
        %1022 = vst [vmem:[%s331 + $0x10] sm:$0xff] %v1009
        %1023 = vst [vmem:[%s331 + $0x18] sm:$0xff] %v1010
        %1024 = vst [vmem:[%s331 + $0x20] sm:$0xff] %v1011
        %1025 = vst [vmem:[%s331 + $0x28] sm:$0xff] %v1012
        %1026 = vst [vmem:[%s331 + $0x30] sm:$0xff] %v1013
        %1027 = vst [vmem:[%s331 + $0x38] sm:$0xff] %v1014
        %1028 = vst [vmem:[%s331 + $0x40] sm:$0xff] %v1015
        %1029 = vst [vmem:[%s331 + $0x48] sm:$0xff] %v1016
        %1030 = vst [vmem:[%s331 + $0x50] sm:$0xff] %v1017
        %1031 = vst [vmem:[%s331 + $0x58] sm:$0xff] %v1018
        %1032 = vst [vmem:[%s331 + $0x60] sm:$0xff] %v1019
        %s1033 = sand.u32 %s185, 1
        %s1034 = scalar_lea.sflag [#allocation4], %s1033
        %s1035 = sand.u32 %s185, 1
        %s1036 = smul.addr %s1035, 104
        %s1037 = scalar_lea.vmem [#allocation8], %s1036
        // Predicated region
        $region61: #{tpu_custom_call.1} parent=47 // pred_check
          %p1038 = pneg %p195
        $region62: #{tpu_custom_call.1} parent=47 // pred_check_branch
          %1040 = sbr.rel (%p1038) target = $region64
        $region63: #{tpu_custom_call.1} parent=47 // pred_region
          %s1041 = smul.u32 13, %s25
          %s1042 = ssub.s32 25, %s1041
          %p1043 = scmp.lt.s32.totalorder %s1042, 13
          %s1044 = scalar_select %p1043, %s1042, 13
          %s1045 = smul.u32 128, %s1044
          %s1047 = ssub.s32 1664, %s1045
          %1048 = vsyncadd %s1034, %s1047
          %p1049 = scmp.ne.s32.totalorder 0, %s1045
          %s1050 = smul.addr %s1041, 128
          %s1051 = scalar_lea.hbm %s7, %s1050
          %s1052 = smul.u32 8, %s1044
          %s1053 = sshll.u32 %s1037, 4
          %s1054 = int_to_ptr.vmem [resolvable:$true] %s1053
          %s1055 = sshll.u32 %s1052, 4
          %1059 = dma.vmem_to_hbm [thread:$0]  (%p1049), %s1054, %s1055, %s1051, %s1034, 128, 128, 8
        $region64: #{tpu_custom_call.1} parent=47 // pred_fallthru
          _
      $region48: #{tpu_custom_call.1} parent=5 // pred_fallthru
        _
      %p1060 = scmp.le.s32.totalorder 2, %s20
      // Predicated region
      $region65: #{tpu_custom_call.1} parent=5 // pred_check
        %p1061 = pneg %p1060
      $region66: #{tpu_custom_call.1} parent=5 // pred_check_branch
        %1063 = sbr.rel (%p1061) target = $region68
      $region67: #{tpu_custom_call.1} parent=5 // pred_region
        %s1064 = ssub.s32 %s20, 2
        // Predicated region
        $region69: #{tpu_custom_call.1} parent=67 // pred_check
          %p1065 = pneg %p201
        $region70: #{tpu_custom_call.1} parent=67 // pred_check_branch
          %1067 = sbr.rel (%p1065) target = $region72
        $region71: #{tpu_custom_call.1} parent=67 // pred_region
          %s1068 = sand.u32 %s186, 1
          %s1069 = scalar_lea.sflag [#allocation4], %s1068
          %s1070 = sand.u32 %s186, 1
          %s1071 = smul.addr %s1070, 104
          %s1072 = scalar_lea.vmem [#allocation8], %s1071
          %1073 = dma.done %s1069, 1664
        $region72: #{tpu_custom_call.1} parent=67 // pred_fallthru
          _
      $region68: #{tpu_custom_call.1} parent=5 // pred_fallthru
        _
    $region6: #{tpu_custom_call.1} parent=1 // loop_footer
      %s24 = sadd.s32 1, %s20
    $region7: #{tpu_custom_call.1} parent=1 // loop_footer_branch
      %19 = sbr.rel target = $region3
    $region8: #{tpu_custom_call.1} parent=1 // loop_exit
      _
    %1074 = vsyncpa [#allocation3], 1
    %s1075 = scalar_lea.sflag [#allocation3], 1
    %1076 = vsyncpa %s1075, 1
    %1077 = vsyncpa [#allocation6], 1
    %1078 = vsyncpa [#allocation4], 1
    %s1079 = scalar_lea.sflag [#allocation4], 1
    %1080 = vsyncpa %s1079, 1

</llo_original>
